<compile_context>
chip_gen: v7x
topology: tpu7x:2x2x1
jax: 0.10.0
libtpu: 0.0.40
codegen_flags: <defaults>
</compile_context>

<pallas_src>
import math

import jax
import jax.numpy as jnp
from jax.experimental import pallas as pl
from jax.experimental.pallas import tpu as pltpu

# Model hyper-parameters (small, consistent with the module's __init__).
TGT_LEN = 8
DIM = 32
ATT_DIM = 32
NUM_HEADS = 4
HEAD_DIM = ATT_DIM // NUM_HEADS
SCALING = 1.0 / math.sqrt(HEAD_DIM)


# ----------------------------------------------------------------------------
# fastexp (Schraudolph bit trick), in-kernel version
# ----------------------------------------------------------------------------
def _fastexp(x):
    """exp(x) approximated by constructing the float32 bit pattern directly,
    matching the PyTorch `fastexp_gist` reference."""
    y = x * 12102203.17133801 + 1064986823.010288
    y = jnp.where(y < 8388608.0, 0.0, y)
    y = jnp.minimum(y, 2139095040.0)
    # All surviving values are in [0, 2139095040] < 2**31, so an int32
    # conversion reproduces numpy's float->uint32 truncation here.
    bits = y.astype(jnp.int32)
    return pltpu.bitcast(bits, jnp.float32)


def _softmax_fastexp(s):
    """own_softmax_fastexp, kept in f32 end-to-end; normalization via the EUP
    approximate reciprocal instead of a VALU divide (perf-review item)."""
    m = jnp.max(s, axis=-1, keepdims=True)
    e = _fastexp(s - m)
    denom = jnp.sum(e, axis=-1, keepdims=True)
    return e * pl.reciprocal(denom, approx=True)


# ----------------------------------------------------------------------------
# Kernel: whole forward pass in one ungridded invocation, all operands in VMEM.
# ----------------------------------------------------------------------------
def mhsa_kernel(x_ref, wq_ref, wk_ref, wv_ref, wout_ref, o_ref):
    x = x_ref[...]                                     # [T, dim]      f32
    w_q = wq_ref[...]                                  # [H, dim, hd]  f32
    w_k = wk_ref[...]                                  # [H, dim, hd]  f32
    w_v = wv_ref[...]                                  # [H, dim, hd]  f32
    w_o = wout_ref[...]                                # [H, hd, dim]  f32

    # Broadcast x over heads once; per-head projections become canonical
    # batched matmuls (same total FLOPs as the fused [dim, 3A] projection,
    # but no in-kernel lane slices / reshapes of the activations).
    xb = jnp.broadcast_to(x, (NUM_HEADS,) + x.shape)   # [H, T, dim]
    q = jnp.einsum('htd,hdk->htk', xb, w_q, preferred_element_type=jnp.float32)
    k = jnp.einsum('htd,hdk->htk', xb, w_k, preferred_element_type=jnp.float32)
    v = jnp.einsum('htd,hdk->htk', xb, w_v, preferred_element_type=jnp.float32)

    # Batched attention over the head axis (no k.T materialization).
    s = jnp.einsum('hqd,hkd->hqk', q, k,
                   preferred_element_type=jnp.float32) * SCALING   # [H, T, T]
    p = _softmax_fastexp(s)                                        # [H, T, T] f32
    o = jnp.einsum('hqk,hkd->hqd', p, v,
                   preferred_element_type=jnp.float32)             # [H, T, hd]

    # Fused output projection: sum_h (o_h @ Wout_h) == concat_h(o_h) @ Wout,
    # so no transpose / concatenate is needed before proj_out.
    out = jnp.einsum('hqd,hdm->hqm', o, w_o,
                     preferred_element_type=jnp.float32)           # [H, T, dim]
    o_ref[...] = jnp.sum(out, axis=0)                              # [T, dim]


def mhsa_forward(x, w_in, w_out):
    t, dim = x.shape
    att = w_out.shape[0]
    nh, hd = NUM_HEADS, att // NUM_HEADS

    # Rearrange weights per head in the wrapper (plain XLA ops, outside the
    # kernel) so the kernel sees only batched-matmul-friendly layouts.
    w_qkv = w_in.reshape(dim, 3, nh, hd).transpose(1, 2, 0, 3)   # [3, H, dim, hd]
    w_q, w_k, w_v = w_qkv[0], w_qkv[1], w_qkv[2]
    w_out_h = w_out.reshape(nh, hd, dim)                         # [H, hd, dim]

    vmem = pltpu.MemorySpace.VMEM
    # Ungridded call: grid=(), no index_maps, no pipeline scaffolding.
    # NOTE(v7x): the module has no batch dim; with batched inputs one would add
    # a leading "parallel" grid axis to use the second TensorCore.
    return pl.pallas_call(
        mhsa_kernel,
        out_shape=jax.ShapeDtypeStruct((t, dim), jnp.float32),
        in_specs=[pl.BlockSpec(memory_space=vmem) for _ in range(5)],
        out_specs=pl.BlockSpec(memory_space=vmem),
    )(x, w_q, w_k, w_v, w_out_h)


# ----------------------------------------------------------------------------
# Pure-JAX reference (mirrors the PyTorch module, incl. bf16 softmax probs),
# used only as a sanity check in __main__.
# ----------------------------------------------------------------------------
def _fastexp_ref(x):
    y = x * 12102203.17133801 + 1064986823.010288
    y = jnp.where(y < 8388608.0, 0.0, y)
    y = jnp.minimum(y, 2139095040.0)
    return jax.lax.bitcast_convert_type(y.astype(jnp.int32), jnp.float32)


def _reference(x, w_in, w_out):
    t, dim = x.shape
    att = w_out.shape[0]
    qkv = x @ w_in
    q, k, v = qkv[:, :att], qkv[:, att:2 * att], qkv[:, 2 * att:]
    q = q.reshape(t, NUM_HEADS, HEAD_DIM).transpose(1, 0, 2)
    k = k.reshape(t, NUM_HEADS, HEAD_DIM).transpose(1, 0, 2)
    v = v.reshape(t, NUM_HEADS, HEAD_DIM).transpose(1, 0, 2)
    s = jnp.einsum('hqd,hkd->hqk', q, k) * SCALING
    e = _fastexp_ref(s - jnp.max(s, axis=-1, keepdims=True))
    e16 = e.astype(jnp.bfloat16)
    p = (e16 / jnp.sum(e16, axis=-1, keepdims=True)).astype(jnp.float32)
    o = jnp.einsum('hqk,hkd->hqd', p, v)
    o = o.transpose(1, 0, 2).reshape(t, att)
    return o @ w_out


if __name__ == "__main__":
    key = jax.random.PRNGKey(0)
    kx, kw1, kw2 = jax.random.split(key, 3)

    # Deterministic synthetic parameters (shapes from the module's __init__).
    x = jax.random.normal(kx, (TGT_LEN, DIM), dtype=jnp.float32)
    w_in = jax.random.normal(kw1, (DIM, 3 * ATT_DIM),
                             dtype=jnp.float32) / math.sqrt(DIM)
    w_out = jax.random.normal(kw2, (ATT_DIM, DIM),
                              dtype=jnp.float32) / math.sqrt(ATT_DIM)

    out = jax.block_until_ready(mhsa_forward(x, w_in, w_out))
    assert out.shape == (TGT_LEN, DIM)
    assert bool(jnp.all(jnp.isfinite(out)))

    # Loose tolerance: kernel keeps softmax in f32 + approx reciprocal, the
    # reference normalizes in bf16 (as the PyTorch module does).
    ref = _reference(x, w_in, w_out)
    assert bool(jnp.allclose(out, ref, rtol=5e-2, atol=5e-2)), \
        float(jnp.max(jnp.abs(out - ref)))

    print("KERNEL_OK")
</pallas_src>

<mosaic_0001>
module attributes {stable_mosaic.version = 11 : i64} {
  func.func @mhsa_kernel(%arg0: memref<8x32xf32, #tpu.memory_space<vmem>>, %arg1: memref<4x32x8xf32, #tpu.memory_space<vmem>>, %arg2: memref<4x32x8xf32, #tpu.memory_space<vmem>>, %arg3: memref<4x32x8xf32, #tpu.memory_space<vmem>>, %arg4: memref<4x8x32xf32, #tpu.memory_space<vmem>>, %arg5: memref<8x32xf32, #tpu.memory_space<vmem>>) attributes {dimension_semantics = [], scalar_prefetch = 0 : i64, scratch_operands = 0 : i64, tpu.core_type = #tpu.core_type<tc>} {
    %c0 = arith.constant 0 : index
    %c0_0 = arith.constant 0 : index
    %0 = vector.load %arg0[%c0, %c0_0] : memref<8x32xf32, #tpu.memory_space<vmem>>, vector<8x32xf32>
    %c0_1 = arith.constant 0 : index
    %c0_2 = arith.constant 0 : index
    %c0_3 = arith.constant 0 : index
    %1 = vector.load %arg1[%c0_1, %c0_2, %c0_3] : memref<4x32x8xf32, #tpu.memory_space<vmem>>, vector<4x32x8xf32>
    %c0_4 = arith.constant 0 : index
    %c0_5 = arith.constant 0 : index
    %c0_6 = arith.constant 0 : index
    %2 = vector.load %arg2[%c0_4, %c0_5, %c0_6] : memref<4x32x8xf32, #tpu.memory_space<vmem>>, vector<4x32x8xf32>
    %c0_7 = arith.constant 0 : index
    %c0_8 = arith.constant 0 : index
    %c0_9 = arith.constant 0 : index
    %3 = vector.load %arg3[%c0_7, %c0_8, %c0_9] : memref<4x32x8xf32, #tpu.memory_space<vmem>>, vector<4x32x8xf32>
    %c0_10 = arith.constant 0 : index
    %c0_11 = arith.constant 0 : index
    %c0_12 = arith.constant 0 : index
    %4 = vector.load %arg4[%c0_10, %c0_11, %c0_12] : memref<4x8x32xf32, #tpu.memory_space<vmem>>, vector<4x8x32xf32>
    %5 = vector.shape_cast %0 : vector<8x32xf32> to vector<1x8x32xf32>
    %6 = vector.broadcast %5 : vector<1x8x32xf32> to vector<4x8x32xf32>
    "tpu.trace_start"() <{level = 10 : i32, message = "htd,hdk->htk"}> : () -> ()
    %cst = arith.constant dense<0.000000e+00> : vector<4x8x8xf32>
    %7 = tpu.matmul %6, %1, %cst {dimension_numbers = #tpu.dot_dimension_numbers<[2], [1], [1], [2], [0, 0, 0, 1, 1, 2], [0], [0]>} : vector<4x8x32xf32>, vector<4x32x8xf32>, vector<4x8x8xf32> -> vector<4x8x8xf32>
    %cst_13 = arith.constant dense<0.000000e+00> : vector<4x8x8xf32>
    %8 = tpu.matmul %6, %2, %cst_13 {dimension_numbers = #tpu.dot_dimension_numbers<[2], [1], [1], [2], [0, 0, 0, 1, 1, 2], [0], [0]>} : vector<4x8x32xf32>, vector<4x32x8xf32>, vector<4x8x8xf32> -> vector<4x8x8xf32>
    %cst_14 = arith.constant dense<0.000000e+00> : vector<4x8x8xf32>
    %9 = tpu.matmul %6, %3, %cst_14 {dimension_numbers = #tpu.dot_dimension_numbers<[2], [1], [1], [2], [0, 0, 0, 1, 1, 2], [0], [0]>} : vector<4x8x32xf32>, vector<4x32x8xf32>, vector<4x8x8xf32> -> vector<4x8x8xf32>
    "tpu.trace_stop"() : () -> ()
    "tpu.trace_start"() <{level = 10 : i32, message = "hqd,hkd->hqk"}> : () -> ()
    %cst_15 = arith.constant dense<0.000000e+00> : vector<4x8x8xf32>
    %10 = tpu.matmul %7, %8, %cst_15 {dimension_numbers = #tpu.dot_dimension_numbers<[2], [2], [1], [1], [0, 0, 0, 1, 1, 1], [0], [0]>} : vector<4x8x8xf32>, vector<4x8x8xf32>, vector<4x8x8xf32> -> vector<4x8x8xf32>
    "tpu.trace_stop"() : () -> ()
    %cst_16 = arith.constant 0.353553385 : f32
    %11 = vector.broadcast %cst_16 : f32 to vector<4x8x8xf32>
    %12 = arith.mulf %10, %11 : vector<4x8x8xf32>
    %cst_17 = arith.constant dense<0xFF800000> : vector<4x8xf32>
    %13 = vector.multi_reduction <maximumf>, %12, %cst_17 [2] : vector<4x8x8xf32> to vector<4x8xf32>
    %14 = vector.shape_cast %13 : vector<4x8xf32> to vector<4x8x1xf32>
    %15 = vector.broadcast %14 : vector<4x8x1xf32> to vector<4x8x8xf32>
    %16 = arith.subf %12, %15 : vector<4x8x8xf32>
    %cst_18 = arith.constant 0x4B38AA3B : f32
    %17 = vector.broadcast %cst_18 : f32 to vector<4x8x8xf32>
    %18 = arith.mulf %16, %17 : vector<4x8x8xf32>
    %cst_19 = arith.constant 1.06498682E+9 : f32
    %19 = vector.broadcast %cst_19 : f32 to vector<4x8x8xf32>
    %20 = arith.addf %18, %19 : vector<4x8x8xf32>
    %cst_20 = arith.constant 0x4B000000 : f32
    %21 = vector.broadcast %cst_20 : f32 to vector<4x8x8xf32>
    %22 = arith.cmpf olt, %20, %21 : vector<4x8x8xf32>
    %cst_21 = arith.constant 0.000000e+00 : f32
    %23 = vector.broadcast %cst_21 : f32 to vector<4x8x8xf32>
    %24 = arith.select %22, %23, %20 : vector<4x8x8xi1>, vector<4x8x8xf32>
    %cst_22 = arith.constant 2.13909504E+9 : f32
    %25 = vector.broadcast %cst_22 : f32 to vector<4x8x8xf32>
    %26 = arith.minimumf %24, %25 : vector<4x8x8xf32>
    %27 = arith.fptosi %26 : vector<4x8x8xf32> to vector<4x8x8xi32>
    %28 = tpu.bitcast %27 : vector<4x8x8xi32> -> vector<4x8x8xf32>
    %cst_23 = arith.constant dense<0.000000e+00> : vector<4x8xf32>
    %29 = vector.multi_reduction <add>, %28, %cst_23 [2] : vector<4x8x8xf32> to vector<4x8xf32>
    %30 = vector.shape_cast %29 : vector<4x8xf32> to vector<4x8x1xf32>
    %31 = tpu.reciprocal %30 {approx = true} : vector<4x8x1xf32> -> vector<4x8x1xf32>
    %32 = vector.broadcast %31 : vector<4x8x1xf32> to vector<4x8x8xf32>
    %33 = arith.mulf %28, %32 : vector<4x8x8xf32>
    "tpu.trace_start"() <{level = 10 : i32, message = "hqk,hkd->hqd"}> : () -> ()
    %cst_24 = arith.constant dense<0.000000e+00> : vector<4x8x8xf32>
    %34 = tpu.matmul %33, %9, %cst_24 {dimension_numbers = #tpu.dot_dimension_numbers<[2], [1], [1], [2], [0, 0, 0, 1, 1, 2], [0], [0]>} : vector<4x8x8xf32>, vector<4x8x8xf32>, vector<4x8x8xf32> -> vector<4x8x8xf32>
    "tpu.trace_stop"() : () -> ()
    "tpu.trace_start"() <{level = 10 : i32, message = "hqd,hdm->hqm"}> : () -> ()
    %cst_25 = arith.constant dense<0.000000e+00> : vector<4x8x32xf32>
    %35 = tpu.matmul %34, %4, %cst_25 {dimension_numbers = #tpu.dot_dimension_numbers<[2], [1], [1], [2], [0, 0, 0, 1, 1, 2], [0], [0]>} : vector<4x8x8xf32>, vector<4x8x32xf32>, vector<4x8x32xf32> -> vector<4x8x32xf32>
    "tpu.trace_stop"() : () -> ()
    %cst_26 = arith.constant dense<0.000000e+00> : vector<8x32xf32>
    %36 = vector.multi_reduction <add>, %35, %cst_26 [0] : vector<4x8x32xf32> to vector<8x32xf32>
    %c0_27 = arith.constant 0 : index
    %c0_28 = arith.constant 0 : index
    %37 = vector.load %arg5[%c0_27, %c0_28] : memref<8x32xf32, #tpu.memory_space<vmem>>, vector<8x32xf32>
    tpu.vector_store %arg5[%c0_27, %c0_28], %36 {strides = array<i32>} : memref<8x32xf32, #tpu.memory_space<vmem>>, vector<8x32xf32>,
    return
  }
}

</mosaic_0001>

<llo_original>
// kernel: tpu_custom_call.1
$region0: #{tpu_custom_call.1}
  #allocation0 [shape = 'u32[]', space=smem, size = 0x4, offset = 0x4, fixed_abs, tag = 'smem constant byte address 0x4 - core index']
  #allocation1 [shape = 'u32[144,128]{1,0:T(1,128)}', space=vmem, size = 0x12000, scoped, tag = 'internal scratch']
  %s0 = inlined_call_operand.vmem [shape: f32[8,32], index: 0, kind: input, shape index: {}]
  %s1 = inlined_call_operand.vmem [shape: f32[4,32,8], index: 1, kind: input, shape index: {}]
  %s2 = inlined_call_operand.vmem [shape: f32[4,32,8], index: 2, kind: input, shape index: {}]
  %s3 = inlined_call_operand.vmem [shape: f32[4,32,8], index: 3, kind: input, shape index: {}]
  %s4 = inlined_call_operand.vmem [shape: f32[4,8,32], index: 4, kind: input, shape index: {}]
  %s5 = inlined_call_operand.hbm [shape: f32[8,32], index: 5, kind: output, shape index: {}]
  %s6 = sld [smem:[#allocation0]]
  $region30: #{tpu_custom_call.1} parent=0
    _
  %s8 = ssub.s32 1, %s6
  %s9 = scalar_select 0, %s8, %s6
  $region1: #{tpu_custom_call.1} parent=0
    #allocation2 [shape = 'u8[4096]{0}', space=vmem, size = 0x1000, scoped, tag = 'output window, operand 0, single buffered']
    #allocation3 [shape = 's32[1]{0}', space=sflag, size = 0x4, scoped, tag = 'scoped memory for tpu_custom_call.1']
    %10 = vsyncpa [#allocation3], 0
    // Predicated region
    $region2: #{tpu_custom_call.1} parent=1 // pred_check
      _
    $region3: #{tpu_custom_call.1} parent=1 // pred_check_branch
      %12 = sbr.rel (0) target = $region5
    $region4: #{tpu_custom_call.1} parent=1 // pred_region
      _
    $region5: #{tpu_custom_call.1} parent=1 // pred_fallthru
      _
    // Predicated region
    $region6: #{tpu_custom_call.1} parent=1 // pred_check
      _
    $region7: #{tpu_custom_call.1} parent=1 // pred_check_branch
      %14 = sbr.rel (0) target = $region9
    $region8: #{tpu_custom_call.1} parent=1 // pred_region
      _
    $region9: #{tpu_custom_call.1} parent=1 // pred_fallthru
      _
    // Predicated region
    $region10: #{tpu_custom_call.1} parent=1 // pred_check
      _
    $region11: #{tpu_custom_call.1} parent=1 // pred_check_branch
      %16 = sbr.rel (0) target = $region13
    $region12: #{tpu_custom_call.1} parent=1 // pred_region
      _
    $region13: #{tpu_custom_call.1} parent=1 // pred_fallthru
      _
    // Predicated region
    $region14: #{tpu_custom_call.1} parent=1 // pred_check
      _
    $region15: #{tpu_custom_call.1} parent=1 // pred_check_branch
      %18 = sbr.rel (0) target = $region17
    $region16: #{tpu_custom_call.1} parent=1 // pred_region
      _
    $region17: #{tpu_custom_call.1} parent=1 // pred_fallthru
      _
    // Predicated region
    $region18: #{tpu_custom_call.1} parent=1 // pred_check
      _
    $region19: #{tpu_custom_call.1} parent=1 // pred_check_branch
      %20 = sbr.rel (0) target = $region21
    $region20: #{tpu_custom_call.1} parent=1 // pred_region
      _
    $region21: #{tpu_custom_call.1} parent=1 // pred_fallthru
      _
    %v21 = vld [vmem:[%s0] sm:$0xff]
    %v22 = vld [vmem:[%s1] sm:$0xff]
    %v23 = vld [vmem:[%s1 + $0x8] sm:$0xff]
    %v24 = vld [vmem:[%s1 + $0x10] sm:$0xff]
    %v25 = vld [vmem:[%s1 + $0x18] sm:$0xff]
    %v26 = vld [vmem:[%s1 + $0x20] sm:$0xff]
    %v27 = vld [vmem:[%s1 + $0x28] sm:$0xff]
    %v28 = vld [vmem:[%s1 + $0x30] sm:$0xff]
    %v29 = vld [vmem:[%s1 + $0x38] sm:$0xff]
    %v30 = vld [vmem:[%s1 + $0x40] sm:$0xff]
    %v31 = vld [vmem:[%s1 + $0x48] sm:$0xff]
    %v32 = vld [vmem:[%s1 + $0x50] sm:$0xff]
    %v33 = vld [vmem:[%s1 + $0x58] sm:$0xff]
    %v34 = vld [vmem:[%s1 + $0x60] sm:$0xff]
    %v35 = vld [vmem:[%s1 + $0x68] sm:$0xff]
    %v36 = vld [vmem:[%s1 + $0x70] sm:$0xff]
    %v37 = vld [vmem:[%s1 + $0x78] sm:$0xff]
    %v38 = vld [vmem:[%s2] sm:$0xff]
    %v39 = vld [vmem:[%s2 + $0x8] sm:$0xff]
    %v40 = vld [vmem:[%s2 + $0x10] sm:$0xff]
    %v41 = vld [vmem:[%s2 + $0x18] sm:$0xff]
    %v42 = vld [vmem:[%s2 + $0x20] sm:$0xff]
    %v43 = vld [vmem:[%s2 + $0x28] sm:$0xff]
    %v44 = vld [vmem:[%s2 + $0x30] sm:$0xff]
    %v45 = vld [vmem:[%s2 + $0x38] sm:$0xff]
    %v46 = vld [vmem:[%s2 + $0x40] sm:$0xff]
    %v47 = vld [vmem:[%s2 + $0x48] sm:$0xff]
    %v48 = vld [vmem:[%s2 + $0x50] sm:$0xff]
    %v49 = vld [vmem:[%s2 + $0x58] sm:$0xff]
    %v50 = vld [vmem:[%s2 + $0x60] sm:$0xff]
    %v51 = vld [vmem:[%s2 + $0x68] sm:$0xff]
    %v52 = vld [vmem:[%s2 + $0x70] sm:$0xff]
    %v53 = vld [vmem:[%s2 + $0x78] sm:$0xff]
    %v54 = vld [vmem:[%s3] sm:$0xff]
    %v55 = vld [vmem:[%s3 + $0x8] sm:$0xff]
    %v56 = vld [vmem:[%s3 + $0x10] sm:$0xff]
    %v57 = vld [vmem:[%s3 + $0x18] sm:$0xff]
    %v58 = vld [vmem:[%s3 + $0x20] sm:$0xff]
    %v59 = vld [vmem:[%s3 + $0x28] sm:$0xff]
    %v60 = vld [vmem:[%s3 + $0x30] sm:$0xff]
    %v61 = vld [vmem:[%s3 + $0x38] sm:$0xff]
    %v62 = vld [vmem:[%s3 + $0x40] sm:$0xff]
    %v63 = vld [vmem:[%s3 + $0x48] sm:$0xff]
    %v64 = vld [vmem:[%s3 + $0x50] sm:$0xff]
    %v65 = vld [vmem:[%s3 + $0x58] sm:$0xff]
    %v66 = vld [vmem:[%s3 + $0x60] sm:$0xff]
    %v67 = vld [vmem:[%s3 + $0x68] sm:$0xff]
    %v68 = vld [vmem:[%s3 + $0x70] sm:$0xff]
    %v69 = vld [vmem:[%s3 + $0x78] sm:$0xff]
    %v70 = vld [vmem:[%s4] sm:$0xff]
    %v71 = vld [vmem:[%s4 + $0x8] sm:$0xff]
    %v72 = vld [vmem:[%s4 + $0x10] sm:$0xff]
    %v73 = vld [vmem:[%s4 + $0x18] sm:$0xff]
    %vm74 = vcmask 261120
    %v76 = vsel %vm74, %v21, 0
    %78 = vmatprep.subr.mxu0 0.0
    %79 = vmatpush1.msra.mxu0 %v22
    %80 = vmatprep.subr.mxu0 0.0
    %81 = vmatpush1.msra.mxu0 %v23
    %82 = vmatprep.subr.mxu0 0.0
    %83 = vmatpush1.msra.mxu0 %v24
    %84 = vmatprep.subr.mxu0 0.0
    %85 = vmatpush1.msra.mxu0 %v25
    %86 = vmatprep.subr.mxu0 0.0
    %87 = vmatpush1.msra.mxu0 0.0
    %88 = vmatprep.subr.mxu0 0.0
    %89 = vmatpush1.msra.mxu0 0.0
    %90 = vmatprep.subr.mxu0 0.0
    %91 = vmatpush1.msra.mxu0 0.0
    %92 = vmatprep.subr.mxu0 0.0
    %93 = vmatpush1.msra.mxu0 0.0
    %94 = vmatprep.subr.mxu0 0.0
    %95 = vmatpush1.msra.mxu0 0.0
    %96 = vmatprep.subr.mxu0 0.0
    %97 = vmatpush1.msra.mxu0 0.0
    %98 = vmatprep.subr.mxu0 0.0
    %99 = vmatpush1.msra.mxu0 0.0
    %100 = vmatprep.subr.mxu0 0.0
    %101 = vmatpush1.msra.mxu0 0.0
    %102 = vmatprep.subr.mxu0 0.0
    %103 = vmatpush1.msra.mxu0 0.0
    %104 = vmatprep.subr.mxu0 0.0
    %105 = vmatpush1.msra.mxu0 0.0
    %106 = vmatprep.subr.mxu0 0.0
    %107 = vmatpush1.msra.mxu0 0.0
    %108 = vmatprep.subr.mxu0 0.0
    %109 = vmatpush1.msra.mxu0 0.0
    %110 = vmatprep.subr.mxu0 0.0
    %111 = vmatpush1.msra.mxu0 0.0
    %112 = vmatprep.subr.mxu0 0.0
    %113 = vmatpush1.msra.mxu0 0.0
    %114 = vmatprep.subr.mxu0 0.0
    %115 = vmatpush1.msra.mxu0 0.0
    %116 = vmatprep.subr.mxu0 0.0
    %117 = vmatpush1.msra.mxu0 0.0
    %118 = vmatprep.subr.mxu0 0.0
    %119 = vmatpush1.msra.mxu0 0.0
    %120 = vmatprep.subr.mxu0 0.0
    %121 = vmatpush1.msra.mxu0 0.0
    %122 = vmatprep.subr.mxu0 0.0
    %123 = vmatpush1.msra.mxu0 0.0
    %124 = vmatprep.subr.mxu0 0.0
    %125 = vmatpush1.msra.mxu0 0.0
    %126 = vmatprep.subr.mxu0 0.0
    %127 = vmatpush1.msra.mxu0 0.0
    %128 = vmatprep.subr.mxu0 0.0
    %129 = vmatpush1.msra.mxu0 0.0
    %130 = vmatprep.subr.mxu0 0.0
    %131 = vmatpush1.msra.mxu0 0.0
    %132 = vmatprep.subr.mxu0 0.0
    %133 = vmatpush1.msra.mxu0 0.0
    %134 = vmatprep.subr.mxu0 0.0
    %135 = vmatpush1.msra.mxu0 0.0
    %136 = vmatprep.subr.mxu0 0.0
    %137 = vmatpush1.msra.mxu0 0.0
    %138 = vmatprep.subr.mxu0 0.0
    %139 = vmatpush1.msra.mxu0 0.0
    %140 = vmatprep.subr.mxu0 0.0
    %141 = vmatpush1.msra.mxu0 0.0
    %142 = vmatprep.mubr.f32.mxu0 0.0
    %143 = vmatmul.mubr.f32.gmra.mrb[0].mxu0 %v76
    %v144 = vpop.f32.mrb[0].mxu0
    %v145 = vadd.f32 0.0, %v144
    %v146 = vpop.f32.mrb[0].mxu0
    %147 = vdwg.mxu0
    %148 = vmatprep.subr.mxu0 0.0
    %149 = vmatpush1.msra.mxu0 %v26
    %150 = vmatprep.subr.mxu0 0.0
    %151 = vmatpush1.msra.mxu0 %v27
    %152 = vmatprep.subr.mxu0 0.0
    %153 = vmatpush1.msra.mxu0 %v28
    %154 = vmatprep.subr.mxu0 0.0
    %155 = vmatpush1.msra.mxu0 %v29
    %156 = vmatprep.subr.mxu0 0.0
    %157 = vmatpush1.msra.mxu0 0.0
    %158 = vmatprep.subr.mxu0 0.0
    %159 = vmatpush1.msra.mxu0 0.0
    %160 = vmatprep.subr.mxu0 0.0
    %161 = vmatpush1.msra.mxu0 0.0
    %162 = vmatprep.subr.mxu0 0.0
    %163 = vmatpush1.msra.mxu0 0.0
    %164 = vmatprep.subr.mxu0 0.0
    %165 = vmatpush1.msra.mxu0 0.0
    %166 = vmatprep.subr.mxu0 0.0
    %167 = vmatpush1.msra.mxu0 0.0
    %168 = vmatprep.subr.mxu0 0.0
    %169 = vmatpush1.msra.mxu0 0.0
    %170 = vmatprep.subr.mxu0 0.0
    %171 = vmatpush1.msra.mxu0 0.0
    %172 = vmatprep.subr.mxu0 0.0
    %173 = vmatpush1.msra.mxu0 0.0
    %174 = vmatprep.subr.mxu0 0.0
    %175 = vmatpush1.msra.mxu0 0.0
    %176 = vmatprep.subr.mxu0 0.0
    %177 = vmatpush1.msra.mxu0 0.0
    %178 = vmatprep.subr.mxu0 0.0
    %179 = vmatpush1.msra.mxu0 0.0
    %180 = vmatprep.subr.mxu0 0.0
    %181 = vmatpush1.msra.mxu0 0.0
    %182 = vmatprep.subr.mxu0 0.0
    %183 = vmatpush1.msra.mxu0 0.0
    %184 = vmatprep.subr.mxu0 0.0
    %185 = vmatpush1.msra.mxu0 0.0
    %186 = vmatprep.subr.mxu0 0.0
    %187 = vmatpush1.msra.mxu0 0.0
    %188 = vmatprep.subr.mxu0 0.0
    %189 = vmatpush1.msra.mxu0 0.0
    %190 = vmatprep.subr.mxu0 0.0
    %191 = vmatpush1.msra.mxu0 0.0
    %192 = vmatprep.subr.mxu0 0.0
    %193 = vmatpush1.msra.mxu0 0.0
    %194 = vmatprep.subr.mxu0 0.0
    %195 = vmatpush1.msra.mxu0 0.0
    %196 = vmatprep.subr.mxu0 0.0
    %197 = vmatpush1.msra.mxu0 0.0
    %198 = vmatprep.subr.mxu0 0.0
    %199 = vmatpush1.msra.mxu0 0.0
    %200 = vmatprep.subr.mxu0 0.0
    %201 = vmatpush1.msra.mxu0 0.0
    %202 = vmatprep.subr.mxu0 0.0
    %203 = vmatpush1.msra.mxu0 0.0
    %204 = vmatprep.subr.mxu0 0.0
    %205 = vmatpush1.msra.mxu0 0.0
    %206 = vmatprep.subr.mxu0 0.0
    %207 = vmatpush1.msra.mxu0 0.0
    %208 = vmatprep.subr.mxu0 0.0
    %209 = vmatpush1.msra.mxu0 0.0
    %210 = vmatprep.subr.mxu0 0.0
    %211 = vmatpush1.msra.mxu0 0.0
    %212 = vmatprep.mubr.f32.mxu0 0.0
    %213 = vmatmul.mubr.f32.gmra.mrb[0].mxu0 %v76
    %v214 = vpop.f32.mrb[0].mxu0
    %v215 = vadd.f32 0.0, %v214
    %v216 = vpop.f32.mrb[0].mxu0
    %217 = vdwg.mxu0
    %218 = vmatprep.subr.mxu0 0.0
    %219 = vmatpush1.msra.mxu0 %v30
    %220 = vmatprep.subr.mxu0 0.0
    %221 = vmatpush1.msra.mxu0 %v31
    %222 = vmatprep.subr.mxu0 0.0
    %223 = vmatpush1.msra.mxu0 %v32
    %224 = vmatprep.subr.mxu0 0.0
    %225 = vmatpush1.msra.mxu0 %v33
    %226 = vmatprep.subr.mxu0 0.0
    %227 = vmatpush1.msra.mxu0 0.0
    %228 = vmatprep.subr.mxu0 0.0
    %229 = vmatpush1.msra.mxu0 0.0
    %230 = vmatprep.subr.mxu0 0.0
    %231 = vmatpush1.msra.mxu0 0.0
    %232 = vmatprep.subr.mxu0 0.0
    %233 = vmatpush1.msra.mxu0 0.0
    %234 = vmatprep.subr.mxu0 0.0
    %235 = vmatpush1.msra.mxu0 0.0
    %236 = vmatprep.subr.mxu0 0.0
    %237 = vmatpush1.msra.mxu0 0.0
    %238 = vmatprep.subr.mxu0 0.0
    %239 = vmatpush1.msra.mxu0 0.0
    %240 = vmatprep.subr.mxu0 0.0
    %241 = vmatpush1.msra.mxu0 0.0
    %242 = vmatprep.subr.mxu0 0.0
    %243 = vmatpush1.msra.mxu0 0.0
    %244 = vmatprep.subr.mxu0 0.0
    %245 = vmatpush1.msra.mxu0 0.0
    %246 = vmatprep.subr.mxu0 0.0
    %247 = vmatpush1.msra.mxu0 0.0
    %248 = vmatprep.subr.mxu0 0.0
    %249 = vmatpush1.msra.mxu0 0.0
    %250 = vmatprep.subr.mxu0 0.0
    %251 = vmatpush1.msra.mxu0 0.0
    %252 = vmatprep.subr.mxu0 0.0
    %253 = vmatpush1.msra.mxu0 0.0
    %254 = vmatprep.subr.mxu0 0.0
    %255 = vmatpush1.msra.mxu0 0.0
    %256 = vmatprep.subr.mxu0 0.0
    %257 = vmatpush1.msra.mxu0 0.0
    %258 = vmatprep.subr.mxu0 0.0
    %259 = vmatpush1.msra.mxu0 0.0
    %260 = vmatprep.subr.mxu0 0.0
    %261 = vmatpush1.msra.mxu0 0.0
    %262 = vmatprep.subr.mxu0 0.0
    %263 = vmatpush1.msra.mxu0 0.0
    %264 = vmatprep.subr.mxu0 0.0
    %265 = vmatpush1.msra.mxu0 0.0
    %266 = vmatprep.subr.mxu0 0.0
    %267 = vmatpush1.msra.mxu0 0.0
    %268 = vmatprep.subr.mxu0 0.0
    %269 = vmatpush1.msra.mxu0 0.0
    %270 = vmatprep.subr.mxu0 0.0
    %271 = vmatpush1.msra.mxu0 0.0
    %272 = vmatprep.subr.mxu0 0.0
    %273 = vmatpush1.msra.mxu0 0.0
    %274 = vmatprep.subr.mxu0 0.0
    %275 = vmatpush1.msra.mxu0 0.0
    %276 = vmatprep.subr.mxu0 0.0
    %277 = vmatpush1.msra.mxu0 0.0
    %278 = vmatprep.subr.mxu0 0.0
    %279 = vmatpush1.msra.mxu0 0.0
    %280 = vmatprep.subr.mxu0 0.0
    %281 = vmatpush1.msra.mxu0 0.0
    %282 = vmatprep.mubr.f32.mxu0 0.0
    %283 = vmatmul.mubr.f32.gmra.mrb[0].mxu0 %v76
    %v284 = vpop.f32.mrb[0].mxu0
    %v285 = vadd.f32 0.0, %v284
    %v286 = vpop.f32.mrb[0].mxu0
    %287 = vdwg.mxu0
    %288 = vmatprep.subr.mxu0 0.0
    %289 = vmatpush1.msra.mxu0 %v34
    %290 = vmatprep.subr.mxu0 0.0
    %291 = vmatpush1.msra.mxu0 %v35
    %292 = vmatprep.subr.mxu0 0.0
    %293 = vmatpush1.msra.mxu0 %v36
    %294 = vmatprep.subr.mxu0 0.0
    %295 = vmatpush1.msra.mxu0 %v37
    %296 = vmatprep.subr.mxu0 0.0
    %297 = vmatpush1.msra.mxu0 0.0
    %298 = vmatprep.subr.mxu0 0.0
    %299 = vmatpush1.msra.mxu0 0.0
    %300 = vmatprep.subr.mxu0 0.0
    %301 = vmatpush1.msra.mxu0 0.0
    %302 = vmatprep.subr.mxu0 0.0
    %303 = vmatpush1.msra.mxu0 0.0
    %304 = vmatprep.subr.mxu0 0.0
    %305 = vmatpush1.msra.mxu0 0.0
    %306 = vmatprep.subr.mxu0 0.0
    %307 = vmatpush1.msra.mxu0 0.0
    %308 = vmatprep.subr.mxu0 0.0
    %309 = vmatpush1.msra.mxu0 0.0
    %310 = vmatprep.subr.mxu0 0.0
    %311 = vmatpush1.msra.mxu0 0.0
    %312 = vmatprep.subr.mxu0 0.0
    %313 = vmatpush1.msra.mxu0 0.0
    %314 = vmatprep.subr.mxu0 0.0
    %315 = vmatpush1.msra.mxu0 0.0
    %316 = vmatprep.subr.mxu0 0.0
    %317 = vmatpush1.msra.mxu0 0.0
    %318 = vmatprep.subr.mxu0 0.0
    %319 = vmatpush1.msra.mxu0 0.0
    %320 = vmatprep.subr.mxu0 0.0
    %321 = vmatpush1.msra.mxu0 0.0
    %322 = vmatprep.subr.mxu0 0.0
    %323 = vmatpush1.msra.mxu0 0.0
    %324 = vmatprep.subr.mxu0 0.0
    %325 = vmatpush1.msra.mxu0 0.0
    %326 = vmatprep.subr.mxu0 0.0
    %327 = vmatpush1.msra.mxu0 0.0
    %328 = vmatprep.subr.mxu0 0.0
    %329 = vmatpush1.msra.mxu0 0.0
    %330 = vmatprep.subr.mxu0 0.0
    %331 = vmatpush1.msra.mxu0 0.0
    %332 = vmatprep.subr.mxu0 0.0
    %333 = vmatpush1.msra.mxu0 0.0
    %334 = vmatprep.subr.mxu0 0.0
    %335 = vmatpush1.msra.mxu0 0.0
    %336 = vmatprep.subr.mxu0 0.0
    %337 = vmatpush1.msra.mxu0 0.0
    %338 = vmatprep.subr.mxu0 0.0
    %339 = vmatpush1.msra.mxu0 0.0
    %340 = vmatprep.subr.mxu0 0.0
    %341 = vmatpush1.msra.mxu0 0.0
    %342 = vmatprep.subr.mxu0 0.0
    %343 = vmatpush1.msra.mxu0 0.0
    %344 = vmatprep.subr.mxu0 0.0
    %345 = vmatpush1.msra.mxu0 0.0
    %346 = vmatprep.subr.mxu0 0.0
    %347 = vmatpush1.msra.mxu0 0.0
    %348 = vmatprep.subr.mxu0 0.0
    %349 = vmatpush1.msra.mxu0 0.0
    %350 = vmatprep.subr.mxu0 0.0
    %351 = vmatpush1.msra.mxu0 0.0
    %352 = vmatprep.mubr.f32.mxu0 0.0
    %353 = vmatmul.mubr.f32.gmra.mrb[0].mxu0 %v76
    %v354 = vpop.f32.mrb[0].mxu0
    %v355 = vadd.f32 0.0, %v354
    %v356 = vpop.f32.mrb[0].mxu0
    %357 = vdwg.mxu0
    %358 = vmatprep.subr.mxu0 0.0
    %359 = vmatpush1.msra.mxu0 %v38
    %360 = vmatprep.subr.mxu0 0.0
    %361 = vmatpush1.msra.mxu0 %v39
    %362 = vmatprep.subr.mxu0 0.0
    %363 = vmatpush1.msra.mxu0 %v40
    %364 = vmatprep.subr.mxu0 0.0
    %365 = vmatpush1.msra.mxu0 %v41
    %366 = vmatprep.subr.mxu0 0.0
    %367 = vmatpush1.msra.mxu0 0.0
    %368 = vmatprep.subr.mxu0 0.0
    %369 = vmatpush1.msra.mxu0 0.0
    %370 = vmatprep.subr.mxu0 0.0
    %371 = vmatpush1.msra.mxu0 0.0
    %372 = vmatprep.subr.mxu0 0.0
    %373 = vmatpush1.msra.mxu0 0.0
    %374 = vmatprep.subr.mxu0 0.0
    %375 = vmatpush1.msra.mxu0 0.0
    %376 = vmatprep.subr.mxu0 0.0
    %377 = vmatpush1.msra.mxu0 0.0
    %378 = vmatprep.subr.mxu0 0.0
    %379 = vmatpush1.msra.mxu0 0.0
    %380 = vmatprep.subr.mxu0 0.0
    %381 = vmatpush1.msra.mxu0 0.0
    %382 = vmatprep.subr.mxu0 0.0
    %383 = vmatpush1.msra.mxu0 0.0
    %384 = vmatprep.subr.mxu0 0.0
    %385 = vmatpush1.msra.mxu0 0.0
    %386 = vmatprep.subr.mxu0 0.0
    %387 = vmatpush1.msra.mxu0 0.0
    %388 = vmatprep.subr.mxu0 0.0
    %389 = vmatpush1.msra.mxu0 0.0
    %390 = vmatprep.subr.mxu0 0.0
    %391 = vmatpush1.msra.mxu0 0.0
    %392 = vmatprep.subr.mxu0 0.0
    %393 = vmatpush1.msra.mxu0 0.0
    %394 = vmatprep.subr.mxu0 0.0
    %395 = vmatpush1.msra.mxu0 0.0
    %396 = vmatprep.subr.mxu0 0.0
    %397 = vmatpush1.msra.mxu0 0.0
    %398 = vmatprep.subr.mxu0 0.0
    %399 = vmatpush1.msra.mxu0 0.0
    %400 = vmatprep.subr.mxu0 0.0
    %401 = vmatpush1.msra.mxu0 0.0
    %402 = vmatprep.subr.mxu0 0.0
    %403 = vmatpush1.msra.mxu0 0.0
    %404 = vmatprep.subr.mxu0 0.0
    %405 = vmatpush1.msra.mxu0 0.0
    %406 = vmatprep.subr.mxu0 0.0
    %407 = vmatpush1.msra.mxu0 0.0
    %408 = vmatprep.subr.mxu0 0.0
    %409 = vmatpush1.msra.mxu0 0.0
    %410 = vmatprep.subr.mxu0 0.0
    %411 = vmatpush1.msra.mxu0 0.0
    %412 = vmatprep.subr.mxu0 0.0
    %413 = vmatpush1.msra.mxu0 0.0
    %414 = vmatprep.subr.mxu0 0.0
    %415 = vmatpush1.msra.mxu0 0.0
    %416 = vmatprep.subr.mxu0 0.0
    %417 = vmatpush1.msra.mxu0 0.0
    %418 = vmatprep.subr.mxu0 0.0
    %419 = vmatpush1.msra.mxu0 0.0
    %420 = vmatprep.subr.mxu0 0.0
    %421 = vmatpush1.msra.mxu0 0.0
    %422 = vmatprep.mubr.f32.mxu0 0.0
    %423 = vmatmul.mubr.f32.gmra.mrb[0].mxu0 %v76
    %v424 = vpop.f32.mrb[0].mxu0
    %v425 = vadd.f32 0.0, %v424
    %v426 = vpop.f32.mrb[0].mxu0
    %427 = vdwg.mxu0
    %428 = vmatprep.subr.mxu0 0.0
    %429 = vmatpush1.msra.mxu0 %v42
    %430 = vmatprep.subr.mxu0 0.0
    %431 = vmatpush1.msra.mxu0 %v43
    %432 = vmatprep.subr.mxu0 0.0
    %433 = vmatpush1.msra.mxu0 %v44
    %434 = vmatprep.subr.mxu0 0.0
    %435 = vmatpush1.msra.mxu0 %v45
    %436 = vmatprep.subr.mxu0 0.0
    %437 = vmatpush1.msra.mxu0 0.0
    %438 = vmatprep.subr.mxu0 0.0
    %439 = vmatpush1.msra.mxu0 0.0
    %440 = vmatprep.subr.mxu0 0.0
    %441 = vmatpush1.msra.mxu0 0.0
    %442 = vmatprep.subr.mxu0 0.0
    %443 = vmatpush1.msra.mxu0 0.0
    %444 = vmatprep.subr.mxu0 0.0
    %445 = vmatpush1.msra.mxu0 0.0
    %446 = vmatprep.subr.mxu0 0.0
    %447 = vmatpush1.msra.mxu0 0.0
    %448 = vmatprep.subr.mxu0 0.0
    %449 = vmatpush1.msra.mxu0 0.0
    %450 = vmatprep.subr.mxu0 0.0
    %451 = vmatpush1.msra.mxu0 0.0
    %452 = vmatprep.subr.mxu0 0.0
    %453 = vmatpush1.msra.mxu0 0.0
    %454 = vmatprep.subr.mxu0 0.0
    %455 = vmatpush1.msra.mxu0 0.0
    %456 = vmatprep.subr.mxu0 0.0
    %457 = vmatpush1.msra.mxu0 0.0
    %458 = vmatprep.subr.mxu0 0.0
    %459 = vmatpush1.msra.mxu0 0.0
    %460 = vmatprep.subr.mxu0 0.0
    %461 = vmatpush1.msra.mxu0 0.0
    %462 = vmatprep.subr.mxu0 0.0
    %463 = vmatpush1.msra.mxu0 0.0
    %464 = vmatprep.subr.mxu0 0.0
    %465 = vmatpush1.msra.mxu0 0.0
    %466 = vmatprep.subr.mxu0 0.0
    %467 = vmatpush1.msra.mxu0 0.0
    %468 = vmatprep.subr.mxu0 0.0
    %469 = vmatpush1.msra.mxu0 0.0
    %470 = vmatprep.subr.mxu0 0.0
    %471 = vmatpush1.msra.mxu0 0.0
    %472 = vmatprep.subr.mxu0 0.0
    %473 = vmatpush1.msra.mxu0 0.0
    %474 = vmatprep.subr.mxu0 0.0
    %475 = vmatpush1.msra.mxu0 0.0
    %476 = vmatprep.subr.mxu0 0.0
    %477 = vmatpush1.msra.mxu0 0.0
    %478 = vmatprep.subr.mxu0 0.0
    %479 = vmatpush1.msra.mxu0 0.0
    %480 = vmatprep.subr.mxu0 0.0
    %481 = vmatpush1.msra.mxu0 0.0
    %482 = vmatprep.subr.mxu0 0.0
    %483 = vmatpush1.msra.mxu0 0.0
    %484 = vmatprep.subr.mxu0 0.0
    %485 = vmatpush1.msra.mxu0 0.0
    %486 = vmatprep.subr.mxu0 0.0
    %487 = vmatpush1.msra.mxu0 0.0
    %488 = vmatprep.subr.mxu0 0.0
    %489 = vmatpush1.msra.mxu0 0.0
    %490 = vmatprep.subr.mxu0 0.0
    %491 = vmatpush1.msra.mxu0 0.0
    %492 = vmatprep.mubr.f32.mxu0 0.0
    %493 = vmatmul.mubr.f32.gmra.mrb[0].mxu0 %v76
    %v494 = vpop.f32.mrb[0].mxu0
    %v495 = vadd.f32 0.0, %v494
    %v496 = vpop.f32.mrb[0].mxu0
    %497 = vdwg.mxu0
    %498 = vmatprep.subr.mxu0 0.0
    %499 = vmatpush1.msra.mxu0 %v46
    %500 = vmatprep.subr.mxu0 0.0
    %501 = vmatpush1.msra.mxu0 %v47
    %502 = vmatprep.subr.mxu0 0.0
    %503 = vmatpush1.msra.mxu0 %v48
    %504 = vmatprep.subr.mxu0 0.0
    %505 = vmatpush1.msra.mxu0 %v49
    %506 = vmatprep.subr.mxu0 0.0
    %507 = vmatpush1.msra.mxu0 0.0
    %508 = vmatprep.subr.mxu0 0.0
    %509 = vmatpush1.msra.mxu0 0.0
    %510 = vmatprep.subr.mxu0 0.0
    %511 = vmatpush1.msra.mxu0 0.0
    %512 = vmatprep.subr.mxu0 0.0
    %513 = vmatpush1.msra.mxu0 0.0
    %514 = vmatprep.subr.mxu0 0.0
    %515 = vmatpush1.msra.mxu0 0.0
    %516 = vmatprep.subr.mxu0 0.0
    %517 = vmatpush1.msra.mxu0 0.0
    %518 = vmatprep.subr.mxu0 0.0
    %519 = vmatpush1.msra.mxu0 0.0
    %520 = vmatprep.subr.mxu0 0.0
    %521 = vmatpush1.msra.mxu0 0.0
    %522 = vmatprep.subr.mxu0 0.0
    %523 = vmatpush1.msra.mxu0 0.0
    %524 = vmatprep.subr.mxu0 0.0
    %525 = vmatpush1.msra.mxu0 0.0
    %526 = vmatprep.subr.mxu0 0.0
    %527 = vmatpush1.msra.mxu0 0.0
    %528 = vmatprep.subr.mxu0 0.0
    %529 = vmatpush1.msra.mxu0 0.0
    %530 = vmatprep.subr.mxu0 0.0
    %531 = vmatpush1.msra.mxu0 0.0
    %532 = vmatprep.subr.mxu0 0.0
    %533 = vmatpush1.msra.mxu0 0.0
    %534 = vmatprep.subr.mxu0 0.0
    %535 = vmatpush1.msra.mxu0 0.0
    %536 = vmatprep.subr.mxu0 0.0
    %537 = vmatpush1.msra.mxu0 0.0
    %538 = vmatprep.subr.mxu0 0.0
    %539 = vmatpush1.msra.mxu0 0.0
    %540 = vmatprep.subr.mxu0 0.0
    %541 = vmatpush1.msra.mxu0 0.0
    %542 = vmatprep.subr.mxu0 0.0
    %543 = vmatpush1.msra.mxu0 0.0
    %544 = vmatprep.subr.mxu0 0.0
    %545 = vmatpush1.msra.mxu0 0.0
    %546 = vmatprep.subr.mxu0 0.0
    %547 = vmatpush1.msra.mxu0 0.0
    %548 = vmatprep.subr.mxu0 0.0
    %549 = vmatpush1.msra.mxu0 0.0
    %550 = vmatprep.subr.mxu0 0.0
    %551 = vmatpush1.msra.mxu0 0.0
    %552 = vmatprep.subr.mxu0 0.0
    %553 = vmatpush1.msra.mxu0 0.0
    %554 = vmatprep.subr.mxu0 0.0
    %555 = vmatpush1.msra.mxu0 0.0
    %556 = vmatprep.subr.mxu0 0.0
    %557 = vmatpush1.msra.mxu0 0.0
    %558 = vmatprep.subr.mxu0 0.0
    %559 = vmatpush1.msra.mxu0 0.0
    %560 = vmatprep.subr.mxu0 0.0
    %561 = vmatpush1.msra.mxu0 0.0
    %562 = vmatprep.mubr.f32.mxu0 0.0
    %563 = vmatmul.mubr.f32.gmra.mrb[0].mxu0 %v76
    %v564 = vpop.f32.mrb[0].mxu0
    %v565 = vadd.f32 0.0, %v564
    %v566 = vpop.f32.mrb[0].mxu0
    %567 = vdwg.mxu0
    %568 = vmatprep.subr.mxu0 0.0
    %569 = vmatpush1.msra.mxu0 %v50
    %570 = vmatprep.subr.mxu0 0.0
    %571 = vmatpush1.msra.mxu0 %v51
    %572 = vmatprep.subr.mxu0 0.0
    %573 = vmatpush1.msra.mxu0 %v52
    %574 = vmatprep.subr.mxu0 0.0
    %575 = vmatpush1.msra.mxu0 %v53
    %576 = vmatprep.subr.mxu0 0.0
    %577 = vmatpush1.msra.mxu0 0.0
    %578 = vmatprep.subr.mxu0 0.0
    %579 = vmatpush1.msra.mxu0 0.0
    %580 = vmatprep.subr.mxu0 0.0
    %581 = vmatpush1.msra.mxu0 0.0
    %582 = vmatprep.subr.mxu0 0.0
    %583 = vmatpush1.msra.mxu0 0.0
    %584 = vmatprep.subr.mxu0 0.0
    %585 = vmatpush1.msra.mxu0 0.0
    %586 = vmatprep.subr.mxu0 0.0
    %587 = vmatpush1.msra.mxu0 0.0
    %588 = vmatprep.subr.mxu0 0.0
    %589 = vmatpush1.msra.mxu0 0.0
    %590 = vmatprep.subr.mxu0 0.0
    %591 = vmatpush1.msra.mxu0 0.0
    %592 = vmatprep.subr.mxu0 0.0
    %593 = vmatpush1.msra.mxu0 0.0
    %594 = vmatprep.subr.mxu0 0.0
    %595 = vmatpush1.msra.mxu0 0.0
    %596 = vmatprep.subr.mxu0 0.0
    %597 = vmatpush1.msra.mxu0 0.0
    %598 = vmatprep.subr.mxu0 0.0
    %599 = vmatpush1.msra.mxu0 0.0
    %600 = vmatprep.subr.mxu0 0.0
    %601 = vmatpush1.msra.mxu0 0.0
    %602 = vmatprep.subr.mxu0 0.0
    %603 = vmatpush1.msra.mxu0 0.0
    %604 = vmatprep.subr.mxu0 0.0
    %605 = vmatpush1.msra.mxu0 0.0
    %606 = vmatprep.subr.mxu0 0.0
    %607 = vmatpush1.msra.mxu0 0.0
    %608 = vmatprep.subr.mxu0 0.0
    %609 = vmatpush1.msra.mxu0 0.0
    %610 = vmatprep.subr.mxu0 0.0
    %611 = vmatpush1.msra.mxu0 0.0
    %612 = vmatprep.subr.mxu0 0.0
    %613 = vmatpush1.msra.mxu0 0.0
    %614 = vmatprep.subr.mxu0 0.0
    %615 = vmatpush1.msra.mxu0 0.0
    %616 = vmatprep.subr.mxu0 0.0
    %617 = vmatpush1.msra.mxu0 0.0
    %618 = vmatprep.subr.mxu0 0.0
    %619 = vmatpush1.msra.mxu0 0.0
    %620 = vmatprep.subr.mxu0 0.0
    %621 = vmatpush1.msra.mxu0 0.0
    %622 = vmatprep.subr.mxu0 0.0
    %623 = vmatpush1.msra.mxu0 0.0
    %624 = vmatprep.subr.mxu0 0.0
    %625 = vmatpush1.msra.mxu0 0.0
    %626 = vmatprep.subr.mxu0 0.0
    %627 = vmatpush1.msra.mxu0 0.0
    %628 = vmatprep.subr.mxu0 0.0
    %629 = vmatpush1.msra.mxu0 0.0
    %630 = vmatprep.subr.mxu0 0.0
    %631 = vmatpush1.msra.mxu0 0.0
    %632 = vmatprep.mubr.f32.mxu0 0.0
    %633 = vmatmul.mubr.f32.gmra.mrb[0].mxu0 %v76
    %v634 = vpop.f32.mrb[0].mxu0
    %v635 = vadd.f32 0.0, %v634
    %v636 = vpop.f32.mrb[0].mxu0
    %637 = vdwg.mxu0
    %638 = vmatprep.subr.mxu0 0.0
    %639 = vmatpush1.msra.mxu0 %v54
    %640 = vmatprep.subr.mxu0 0.0
    %641 = vmatpush1.msra.mxu0 %v55
    %642 = vmatprep.subr.mxu0 0.0
    %643 = vmatpush1.msra.mxu0 %v56
    %644 = vmatprep.subr.mxu0 0.0
    %645 = vmatpush1.msra.mxu0 %v57
    %646 = vmatprep.subr.mxu0 0.0
    %647 = vmatpush1.msra.mxu0 0.0
    %648 = vmatprep.subr.mxu0 0.0
    %649 = vmatpush1.msra.mxu0 0.0
    %650 = vmatprep.subr.mxu0 0.0
    %651 = vmatpush1.msra.mxu0 0.0
    %652 = vmatprep.subr.mxu0 0.0
    %653 = vmatpush1.msra.mxu0 0.0
    %654 = vmatprep.subr.mxu0 0.0
    %655 = vmatpush1.msra.mxu0 0.0
    %656 = vmatprep.subr.mxu0 0.0
    %657 = vmatpush1.msra.mxu0 0.0
    %658 = vmatprep.subr.mxu0 0.0
    %659 = vmatpush1.msra.mxu0 0.0
    %660 = vmatprep.subr.mxu0 0.0
    %661 = vmatpush1.msra.mxu0 0.0
    %662 = vmatprep.subr.mxu0 0.0
    %663 = vmatpush1.msra.mxu0 0.0
    %664 = vmatprep.subr.mxu0 0.0
    %665 = vmatpush1.msra.mxu0 0.0
    %666 = vmatprep.subr.mxu0 0.0
    %667 = vmatpush1.msra.mxu0 0.0
    %668 = vmatprep.subr.mxu0 0.0
    %669 = vmatpush1.msra.mxu0 0.0
    %670 = vmatprep.subr.mxu0 0.0
    %671 = vmatpush1.msra.mxu0 0.0
    %672 = vmatprep.subr.mxu0 0.0
    %673 = vmatpush1.msra.mxu0 0.0
    %674 = vmatprep.subr.mxu0 0.0
    %675 = vmatpush1.msra.mxu0 0.0
    %676 = vmatprep.subr.mxu0 0.0
    %677 = vmatpush1.msra.mxu0 0.0
    %678 = vmatprep.subr.mxu0 0.0
    %679 = vmatpush1.msra.mxu0 0.0
    %680 = vmatprep.subr.mxu0 0.0
    %681 = vmatpush1.msra.mxu0 0.0
    %682 = vmatprep.subr.mxu0 0.0
    %683 = vmatpush1.msra.mxu0 0.0
    %684 = vmatprep.subr.mxu0 0.0
    %685 = vmatpush1.msra.mxu0 0.0
    %686 = vmatprep.subr.mxu0 0.0
    %687 = vmatpush1.msra.mxu0 0.0
    %688 = vmatprep.subr.mxu0 0.0
    %689 = vmatpush1.msra.mxu0 0.0
    %690 = vmatprep.subr.mxu0 0.0
    %691 = vmatpush1.msra.mxu0 0.0
    %692 = vmatprep.subr.mxu0 0.0
    %693 = vmatpush1.msra.mxu0 0.0
    %694 = vmatprep.subr.mxu0 0.0
    %695 = vmatpush1.msra.mxu0 0.0
    %696 = vmatprep.subr.mxu0 0.0
    %697 = vmatpush1.msra.mxu0 0.0
    %698 = vmatprep.subr.mxu0 0.0
    %699 = vmatpush1.msra.mxu0 0.0
    %700 = vmatprep.subr.mxu0 0.0
    %701 = vmatpush1.msra.mxu0 0.0
    %702 = vmatprep.mubr.f32.mxu0 0.0
    %703 = vmatmul.mubr.f32.gmra.mrb[0].mxu0 %v76
    %v704 = vpop.f32.mrb[0].mxu0
    %v705 = vadd.f32 0.0, %v704
    %v706 = vpop.f32.mrb[0].mxu0
    %707 = vdwg.mxu0
    %708 = vmatprep.subr.mxu0 0.0
    %709 = vmatpush1.msra.mxu0 %v58
    %710 = vmatprep.subr.mxu0 0.0
    %711 = vmatpush1.msra.mxu0 %v59
    %712 = vmatprep.subr.mxu0 0.0
    %713 = vmatpush1.msra.mxu0 %v60
    %714 = vmatprep.subr.mxu0 0.0
    %715 = vmatpush1.msra.mxu0 %v61
    %716 = vmatprep.subr.mxu0 0.0
    %717 = vmatpush1.msra.mxu0 0.0
    %718 = vmatprep.subr.mxu0 0.0
    %719 = vmatpush1.msra.mxu0 0.0
    %720 = vmatprep.subr.mxu0 0.0
    %721 = vmatpush1.msra.mxu0 0.0
    %722 = vmatprep.subr.mxu0 0.0
    %723 = vmatpush1.msra.mxu0 0.0
    %724 = vmatprep.subr.mxu0 0.0
    %725 = vmatpush1.msra.mxu0 0.0
    %726 = vmatprep.subr.mxu0 0.0
    %727 = vmatpush1.msra.mxu0 0.0
    %728 = vmatprep.subr.mxu0 0.0
    %729 = vmatpush1.msra.mxu0 0.0
    %730 = vmatprep.subr.mxu0 0.0
    %731 = vmatpush1.msra.mxu0 0.0
    %732 = vmatprep.subr.mxu0 0.0
    %733 = vmatpush1.msra.mxu0 0.0
    %734 = vmatprep.subr.mxu0 0.0
    %735 = vmatpush1.msra.mxu0 0.0
    %736 = vmatprep.subr.mxu0 0.0
    %737 = vmatpush1.msra.mxu0 0.0
    %738 = vmatprep.subr.mxu0 0.0
    %739 = vmatpush1.msra.mxu0 0.0
    %740 = vmatprep.subr.mxu0 0.0
    %741 = vmatpush1.msra.mxu0 0.0
    %742 = vmatprep.subr.mxu0 0.0
    %743 = vmatpush1.msra.mxu0 0.0
    %744 = vmatprep.subr.mxu0 0.0
    %745 = vmatpush1.msra.mxu0 0.0
    %746 = vmatprep.subr.mxu0 0.0
    %747 = vmatpush1.msra.mxu0 0.0
    %748 = vmatprep.subr.mxu0 0.0
    %749 = vmatpush1.msra.mxu0 0.0
    %750 = vmatprep.subr.mxu0 0.0
    %751 = vmatpush1.msra.mxu0 0.0
    %752 = vmatprep.subr.mxu0 0.0
    %753 = vmatpush1.msra.mxu0 0.0
    %754 = vmatprep.subr.mxu0 0.0
    %755 = vmatpush1.msra.mxu0 0.0
    %756 = vmatprep.subr.mxu0 0.0
    %757 = vmatpush1.msra.mxu0 0.0
    %758 = vmatprep.subr.mxu0 0.0
    %759 = vmatpush1.msra.mxu0 0.0
    %760 = vmatprep.subr.mxu0 0.0
    %761 = vmatpush1.msra.mxu0 0.0
    %762 = vmatprep.subr.mxu0 0.0
    %763 = vmatpush1.msra.mxu0 0.0
    %764 = vmatprep.subr.mxu0 0.0
    %765 = vmatpush1.msra.mxu0 0.0
    %766 = vmatprep.subr.mxu0 0.0
    %767 = vmatpush1.msra.mxu0 0.0
    %768 = vmatprep.subr.mxu0 0.0
    %769 = vmatpush1.msra.mxu0 0.0
    %770 = vmatprep.subr.mxu0 0.0
    %771 = vmatpush1.msra.mxu0 0.0
    %772 = vmatprep.mubr.f32.mxu0 0.0
    %773 = vmatmul.mubr.f32.gmra.mrb[0].mxu0 %v76
    %v774 = vpop.f32.mrb[0].mxu0
    %v775 = vadd.f32 0.0, %v774
    %v776 = vpop.f32.mrb[0].mxu0
    %777 = vdwg.mxu0
    %778 = vmatprep.subr.mxu0 0.0
    %779 = vmatpush1.msra.mxu0 %v62
    %780 = vmatprep.subr.mxu0 0.0
    %781 = vmatpush1.msra.mxu0 %v63
    %782 = vmatprep.subr.mxu0 0.0
    %783 = vmatpush1.msra.mxu0 %v64
    %784 = vmatprep.subr.mxu0 0.0
    %785 = vmatpush1.msra.mxu0 %v65
    %786 = vmatprep.subr.mxu0 0.0
    %787 = vmatpush1.msra.mxu0 0.0
    %788 = vmatprep.subr.mxu0 0.0
    %789 = vmatpush1.msra.mxu0 0.0
    %790 = vmatprep.subr.mxu0 0.0
    %791 = vmatpush1.msra.mxu0 0.0
    %792 = vmatprep.subr.mxu0 0.0
    %793 = vmatpush1.msra.mxu0 0.0
    %794 = vmatprep.subr.mxu0 0.0
    %795 = vmatpush1.msra.mxu0 0.0
    %796 = vmatprep.subr.mxu0 0.0
    %797 = vmatpush1.msra.mxu0 0.0
    %798 = vmatprep.subr.mxu0 0.0
    %799 = vmatpush1.msra.mxu0 0.0
    %800 = vmatprep.subr.mxu0 0.0
    %801 = vmatpush1.msra.mxu0 0.0
    %802 = vmatprep.subr.mxu0 0.0
    %803 = vmatpush1.msra.mxu0 0.0
    %804 = vmatprep.subr.mxu0 0.0
    %805 = vmatpush1.msra.mxu0 0.0
    %806 = vmatprep.subr.mxu0 0.0
    %807 = vmatpush1.msra.mxu0 0.0
    %808 = vmatprep.subr.mxu0 0.0
    %809 = vmatpush1.msra.mxu0 0.0
    %810 = vmatprep.subr.mxu0 0.0
    %811 = vmatpush1.msra.mxu0 0.0
    %812 = vmatprep.subr.mxu0 0.0
    %813 = vmatpush1.msra.mxu0 0.0
    %814 = vmatprep.subr.mxu0 0.0
    %815 = vmatpush1.msra.mxu0 0.0
    %816 = vmatprep.subr.mxu0 0.0
    %817 = vmatpush1.msra.mxu0 0.0
    %818 = vmatprep.subr.mxu0 0.0
    %819 = vmatpush1.msra.mxu0 0.0
    %820 = vmatprep.subr.mxu0 0.0
    %821 = vmatpush1.msra.mxu0 0.0
    %822 = vmatprep.subr.mxu0 0.0
    %823 = vmatpush1.msra.mxu0 0.0
    %824 = vmatprep.subr.mxu0 0.0
    %825 = vmatpush1.msra.mxu0 0.0
    %826 = vmatprep.subr.mxu0 0.0
    %827 = vmatpush1.msra.mxu0 0.0
    %828 = vmatprep.subr.mxu0 0.0
    %829 = vmatpush1.msra.mxu0 0.0
    %830 = vmatprep.subr.mxu0 0.0
    %831 = vmatpush1.msra.mxu0 0.0
    %832 = vmatprep.subr.mxu0 0.0
    %833 = vmatpush1.msra.mxu0 0.0
    %834 = vmatprep.subr.mxu0 0.0
    %835 = vmatpush1.msra.mxu0 0.0
    %836 = vmatprep.subr.mxu0 0.0
    %837 = vmatpush1.msra.mxu0 0.0
    %838 = vmatprep.subr.mxu0 0.0
    %839 = vmatpush1.msra.mxu0 0.0
    %840 = vmatprep.subr.mxu0 0.0
    %841 = vmatpush1.msra.mxu0 0.0
    %842 = vmatprep.mubr.f32.mxu0 0.0
    %843 = vmatmul.mubr.f32.gmra.mrb[0].mxu0 %v76
    %v844 = vpop.f32.mrb[0].mxu0
    %v845 = vadd.f32 0.0, %v844
    %v846 = vpop.f32.mrb[0].mxu0
    %847 = vdwg.mxu0
    %848 = vmatprep.subr.mxu0 0.0
    %849 = vmatpush1.msra.mxu0 %v66
    %850 = vmatprep.subr.mxu0 0.0
    %851 = vmatpush1.msra.mxu0 %v67
    %852 = vmatprep.subr.mxu0 0.0
    %853 = vmatpush1.msra.mxu0 %v68
    %854 = vmatprep.subr.mxu0 0.0
    %855 = vmatpush1.msra.mxu0 %v69
    %856 = vmatprep.subr.mxu0 0.0
    %857 = vmatpush1.msra.mxu0 0.0
    %858 = vmatprep.subr.mxu0 0.0
    %859 = vmatpush1.msra.mxu0 0.0
    %860 = vmatprep.subr.mxu0 0.0
    %861 = vmatpush1.msra.mxu0 0.0
    %862 = vmatprep.subr.mxu0 0.0
    %863 = vmatpush1.msra.mxu0 0.0
    %864 = vmatprep.subr.mxu0 0.0
    %865 = vmatpush1.msra.mxu0 0.0
    %866 = vmatprep.subr.mxu0 0.0
    %867 = vmatpush1.msra.mxu0 0.0
    %868 = vmatprep.subr.mxu0 0.0
    %869 = vmatpush1.msra.mxu0 0.0
    %870 = vmatprep.subr.mxu0 0.0
    %871 = vmatpush1.msra.mxu0 0.0
    %872 = vmatprep.subr.mxu0 0.0
    %873 = vmatpush1.msra.mxu0 0.0
    %874 = vmatprep.subr.mxu0 0.0
    %875 = vmatpush1.msra.mxu0 0.0
    %876 = vmatprep.subr.mxu0 0.0
    %877 = vmatpush1.msra.mxu0 0.0
    %878 = vmatprep.subr.mxu0 0.0
    %879 = vmatpush1.msra.mxu0 0.0
    %880 = vmatprep.subr.mxu0 0.0
    %881 = vmatpush1.msra.mxu0 0.0
    %882 = vmatprep.subr.mxu0 0.0
    %883 = vmatpush1.msra.mxu0 0.0
    %884 = vmatprep.subr.mxu0 0.0
    %885 = vmatpush1.msra.mxu0 0.0
    %886 = vmatprep.subr.mxu0 0.0
    %887 = vmatpush1.msra.mxu0 0.0
    %888 = vmatprep.subr.mxu0 0.0
    %889 = vmatpush1.msra.mxu0 0.0
    %890 = vmatprep.subr.mxu0 0.0
    %891 = vmatpush1.msra.mxu0 0.0
    %892 = vmatprep.subr.mxu0 0.0
    %893 = vmatpush1.msra.mxu0 0.0
    %894 = vmatprep.subr.mxu0 0.0
    %895 = vmatpush1.msra.mxu0 0.0
    %896 = vmatprep.subr.mxu0 0.0
    %897 = vmatpush1.msra.mxu0 0.0
    %898 = vmatprep.subr.mxu0 0.0
    %899 = vmatpush1.msra.mxu0 0.0
    %900 = vmatprep.subr.mxu0 0.0
    %901 = vmatpush1.msra.mxu0 0.0
    %902 = vmatprep.subr.mxu0 0.0
    %903 = vmatpush1.msra.mxu0 0.0
    %904 = vmatprep.subr.mxu0 0.0
    %905 = vmatpush1.msra.mxu0 0.0
    %906 = vmatprep.subr.mxu0 0.0
    %907 = vmatpush1.msra.mxu0 0.0
    %908 = vmatprep.subr.mxu0 0.0
    %909 = vmatpush1.msra.mxu0 0.0
    %910 = vmatprep.subr.mxu0 0.0
    %911 = vmatpush1.msra.mxu0 0.0
    %912 = vmatprep.mubr.f32.mxu0 0.0
    %913 = vmatmul.mubr.f32.gmra.mrb[0].mxu0 %v76
    %v914 = vpop.f32.mrb[0].mxu0
    %v915 = vadd.f32 0.0, %v914
    %v916 = vpop.f32.mrb[0].mxu0
    %917 = vdwg.mxu0
    %vm918 = vcmask 64512
    %v920 = vsel %vm918, %v145, 0
    %v923 = vsel %vm918, %v425, 0
    %925 = vmatprep.subr.mxu0 0.0
    %926 = vmatpush1.xpose.msra.mxu0 %v923
    %927 = vmatprep.subr.mxu0 0.0
    %928 = vmatpush1.xpose.msra.mxu0 0.0
    %929 = vmatprep.subr.mxu0 0.0
    %930 = vmatpush1.xpose.msra.mxu0 0.0
    %931 = vmatprep.subr.mxu0 0.0
    %932 = vmatpush1.xpose.msra.mxu0 0.0
    %933 = vmatprep.subr.mxu0 0.0
    %934 = vmatpush1.xpose.msra.mxu0 0.0
    %935 = vmatprep.subr.mxu0 0.0
    %936 = vmatpush1.xpose.msra.mxu0 0.0
    %937 = vmatprep.subr.mxu0 0.0
    %938 = vmatpush1.xpose.msra.mxu0 0.0
    %939 = vmatprep.subr.mxu0 0.0
    %940 = vmatpush1.xpose.msra.mxu0 0.0
    %941 = vmatprep.subr.mxu0 0.0
    %942 = vmatpush1.xpose.msra.mxu0 0.0
    %943 = vmatprep.subr.mxu0 0.0
    %944 = vmatpush1.xpose.msra.mxu0 0.0
    %945 = vmatprep.subr.mxu0 0.0
    %946 = vmatpush1.xpose.msra.mxu0 0.0
    %947 = vmatprep.subr.mxu0 0.0
    %948 = vmatpush1.xpose.msra.mxu0 0.0
    %949 = vmatprep.subr.mxu0 0.0
    %950 = vmatpush1.xpose.msra.mxu0 0.0
    %951 = vmatprep.subr.mxu0 0.0
    %952 = vmatpush1.xpose.msra.mxu0 0.0
    %953 = vmatprep.subr.mxu0 0.0
    %954 = vmatpush1.xpose.msra.mxu0 0.0
    %955 = vmatprep.subr.mxu0 0.0
    %956 = vmatpush1.xpose.msra.mxu0 0.0
    %957 = vmatprep.subr.mxu0 0.0
    %958 = vmatpush1.xpose.msra.mxu0 0.0
    %959 = vmatprep.subr.mxu0 0.0
    %960 = vmatpush1.xpose.msra.mxu0 0.0
    %961 = vmatprep.subr.mxu0 0.0
    %962 = vmatpush1.xpose.msra.mxu0 0.0
    %963 = vmatprep.subr.mxu0 0.0
    %964 = vmatpush1.xpose.msra.mxu0 0.0
    %965 = vmatprep.subr.mxu0 0.0
    %966 = vmatpush1.xpose.msra.mxu0 0.0
    %967 = vmatprep.subr.mxu0 0.0
    %968 = vmatpush1.xpose.msra.mxu0 0.0
    %969 = vmatprep.subr.mxu0 0.0
    %970 = vmatpush1.xpose.msra.mxu0 0.0
    %971 = vmatprep.subr.mxu0 0.0
    %972 = vmatpush1.xpose.msra.mxu0 0.0
    %973 = vmatprep.subr.mxu0 0.0
    %974 = vmatpush1.xpose.msra.mxu0 0.0
    %975 = vmatprep.subr.mxu0 0.0
    %976 = vmatpush1.xpose.msra.mxu0 0.0
    %977 = vmatprep.subr.mxu0 0.0
    %978 = vmatpush1.xpose.msra.mxu0 0.0
    %979 = vmatprep.subr.mxu0 0.0
    %980 = vmatpush1.xpose.msra.mxu0 0.0
    %981 = vmatprep.subr.mxu0 0.0
    %982 = vmatpush1.xpose.msra.mxu0 0.0
    %983 = vmatprep.subr.mxu0 0.0
    %984 = vmatpush1.xpose.msra.mxu0 0.0
    %985 = vmatprep.subr.mxu0 0.0
    %986 = vmatpush1.xpose.msra.mxu0 0.0
    %987 = vmatprep.subr.mxu0 0.0
    %988 = vmatpush1.xpose.msra.mxu0 0.0
    %989 = vmatprep.mubr.f32.mxu0 0.0
    %990 = vmatmul.mubr.f32.gmra.mrb[0].mxu0 %v920
    %v991 = vpop.f32.mrb[0].mxu0
    %v992 = vadd.f32 0.0, %v991
    %v993 = vpop.f32.mrb[0].mxu0
    %994 = vdwg.mxu0
    %v996 = vsel %vm918, %v215, 0
    %v999 = vsel %vm918, %v495, 0
    %1001 = vmatprep.subr.mxu0 0.0
    %1002 = vmatpush1.xpose.msra.mxu0 %v999
    %1003 = vmatprep.subr.mxu0 0.0
    %1004 = vmatpush1.xpose.msra.mxu0 0.0
    %1005 = vmatprep.subr.mxu0 0.0
    %1006 = vmatpush1.xpose.msra.mxu0 0.0
    %1007 = vmatprep.subr.mxu0 0.0
    %1008 = vmatpush1.xpose.msra.mxu0 0.0
    %1009 = vmatprep.subr.mxu0 0.0
    %1010 = vmatpush1.xpose.msra.mxu0 0.0
    %1011 = vmatprep.subr.mxu0 0.0
    %1012 = vmatpush1.xpose.msra.mxu0 0.0
    %1013 = vmatprep.subr.mxu0 0.0
    %1014 = vmatpush1.xpose.msra.mxu0 0.0
    %1015 = vmatprep.subr.mxu0 0.0
    %1016 = vmatpush1.xpose.msra.mxu0 0.0
    %1017 = vmatprep.subr.mxu0 0.0
    %1018 = vmatpush1.xpose.msra.mxu0 0.0
    %1019 = vmatprep.subr.mxu0 0.0
    %1020 = vmatpush1.xpose.msra.mxu0 0.0
    %1021 = vmatprep.subr.mxu0 0.0
    %1022 = vmatpush1.xpose.msra.mxu0 0.0
    %1023 = vmatprep.subr.mxu0 0.0
    %1024 = vmatpush1.xpose.msra.mxu0 0.0
    %1025 = vmatprep.subr.mxu0 0.0
    %1026 = vmatpush1.xpose.msra.mxu0 0.0
    %1027 = vmatprep.subr.mxu0 0.0
    %1028 = vmatpush1.xpose.msra.mxu0 0.0
    %1029 = vmatprep.subr.mxu0 0.0
    %1030 = vmatpush1.xpose.msra.mxu0 0.0
    %1031 = vmatprep.subr.mxu0 0.0
    %1032 = vmatpush1.xpose.msra.mxu0 0.0
    %1033 = vmatprep.subr.mxu0 0.0
    %1034 = vmatpush1.xpose.msra.mxu0 0.0
    %1035 = vmatprep.subr.mxu0 0.0
    %1036 = vmatpush1.xpose.msra.mxu0 0.0
    %1037 = vmatprep.subr.mxu0 0.0
    %1038 = vmatpush1.xpose.msra.mxu0 0.0
    %1039 = vmatprep.subr.mxu0 0.0
    %1040 = vmatpush1.xpose.msra.mxu0 0.0
    %1041 = vmatprep.subr.mxu0 0.0
    %1042 = vmatpush1.xpose.msra.mxu0 0.0
    %1043 = vmatprep.subr.mxu0 0.0
    %1044 = vmatpush1.xpose.msra.mxu0 0.0
    %1045 = vmatprep.subr.mxu0 0.0
    %1046 = vmatpush1.xpose.msra.mxu0 0.0
    %1047 = vmatprep.subr.mxu0 0.0
    %1048 = vmatpush1.xpose.msra.mxu0 0.0
    %1049 = vmatprep.subr.mxu0 0.0
    %1050 = vmatpush1.xpose.msra.mxu0 0.0
    %1051 = vmatprep.subr.mxu0 0.0
    %1052 = vmatpush1.xpose.msra.mxu0 0.0
    %1053 = vmatprep.subr.mxu0 0.0
    %1054 = vmatpush1.xpose.msra.mxu0 0.0
    %1055 = vmatprep.subr.mxu0 0.0
    %1056 = vmatpush1.xpose.msra.mxu0 0.0
    %1057 = vmatprep.subr.mxu0 0.0
    %1058 = vmatpush1.xpose.msra.mxu0 0.0
    %1059 = vmatprep.subr.mxu0 0.0
    %1060 = vmatpush1.xpose.msra.mxu0 0.0
    %1061 = vmatprep.subr.mxu0 0.0
    %1062 = vmatpush1.xpose.msra.mxu0 0.0
    %1063 = vmatprep.subr.mxu0 0.0
    %1064 = vmatpush1.xpose.msra.mxu0 0.0
    %1065 = vmatprep.mubr.f32.mxu0 0.0
    %1066 = vmatmul.mubr.f32.gmra.mrb[0].mxu0 %v996
    %v1067 = vpop.f32.mrb[0].mxu0
    %v1068 = vadd.f32 0.0, %v1067
    %v1069 = vpop.f32.mrb[0].mxu0
    %1070 = vdwg.mxu0
    %v1072 = vsel %vm918, %v285, 0
    %v1075 = vsel %vm918, %v565, 0
    %1077 = vmatprep.subr.mxu0 0.0
    %1078 = vmatpush1.xpose.msra.mxu0 %v1075
    %1079 = vmatprep.subr.mxu0 0.0
    %1080 = vmatpush1.xpose.msra.mxu0 0.0
    %1081 = vmatprep.subr.mxu0 0.0
    %1082 = vmatpush1.xpose.msra.mxu0 0.0
    %1083 = vmatprep.subr.mxu0 0.0
    %1084 = vmatpush1.xpose.msra.mxu0 0.0
    %1085 = vmatprep.subr.mxu0 0.0
    %1086 = vmatpush1.xpose.msra.mxu0 0.0
    %1087 = vmatprep.subr.mxu0 0.0
    %1088 = vmatpush1.xpose.msra.mxu0 0.0
    %1089 = vmatprep.subr.mxu0 0.0
    %1090 = vmatpush1.xpose.msra.mxu0 0.0
    %1091 = vmatprep.subr.mxu0 0.0
    %1092 = vmatpush1.xpose.msra.mxu0 0.0
    %1093 = vmatprep.subr.mxu0 0.0
    %1094 = vmatpush1.xpose.msra.mxu0 0.0
    %1095 = vmatprep.subr.mxu0 0.0
    %1096 = vmatpush1.xpose.msra.mxu0 0.0
    %1097 = vmatprep.subr.mxu0 0.0
    %1098 = vmatpush1.xpose.msra.mxu0 0.0
    %1099 = vmatprep.subr.mxu0 0.0
    %1100 = vmatpush1.xpose.msra.mxu0 0.0
    %1101 = vmatprep.subr.mxu0 0.0
    %1102 = vmatpush1.xpose.msra.mxu0 0.0
    %1103 = vmatprep.subr.mxu0 0.0
    %1104 = vmatpush1.xpose.msra.mxu0 0.0
    %1105 = vmatprep.subr.mxu0 0.0
    %1106 = vmatpush1.xpose.msra.mxu0 0.0
    %1107 = vmatprep.subr.mxu0 0.0
    %1108 = vmatpush1.xpose.msra.mxu0 0.0
    %1109 = vmatprep.subr.mxu0 0.0
    %1110 = vmatpush1.xpose.msra.mxu0 0.0
    %1111 = vmatprep.subr.mxu0 0.0
    %1112 = vmatpush1.xpose.msra.mxu0 0.0
    %1113 = vmatprep.subr.mxu0 0.0
    %1114 = vmatpush1.xpose.msra.mxu0 0.0
    %1115 = vmatprep.subr.mxu0 0.0
    %1116 = vmatpush1.xpose.msra.mxu0 0.0
    %1117 = vmatprep.subr.mxu0 0.0
    %1118 = vmatpush1.xpose.msra.mxu0 0.0
    %1119 = vmatprep.subr.mxu0 0.0
    %1120 = vmatpush1.xpose.msra.mxu0 0.0
    %1121 = vmatprep.subr.mxu0 0.0
    %1122 = vmatpush1.xpose.msra.mxu0 0.0
    %1123 = vmatprep.subr.mxu0 0.0
    %1124 = vmatpush1.xpose.msra.mxu0 0.0
    %1125 = vmatprep.subr.mxu0 0.0
    %1126 = vmatpush1.xpose.msra.mxu0 0.0
    %1127 = vmatprep.subr.mxu0 0.0
    %1128 = vmatpush1.xpose.msra.mxu0 0.0
    %1129 = vmatprep.subr.mxu0 0.0
    %1130 = vmatpush1.xpose.msra.mxu0 0.0
    %1131 = vmatprep.subr.mxu0 0.0
    %1132 = vmatpush1.xpose.msra.mxu0 0.0
    %1133 = vmatprep.subr.mxu0 0.0
    %1134 = vmatpush1.xpose.msra.mxu0 0.0
    %1135 = vmatprep.subr.mxu0 0.0
    %1136 = vmatpush1.xpose.msra.mxu0 0.0
    %1137 = vmatprep.subr.mxu0 0.0
    %1138 = vmatpush1.xpose.msra.mxu0 0.0
    %1139 = vmatprep.subr.mxu0 0.0
    %1140 = vmatpush1.xpose.msra.mxu0 0.0
    %1141 = vmatprep.mubr.f32.mxu0 0.0
    %1142 = vmatmul.mubr.f32.gmra.mrb[0].mxu0 %v1072
    %v1143 = vpop.f32.mrb[0].mxu0
    %v1144 = vadd.f32 0.0, %v1143
    %v1145 = vpop.f32.mrb[0].mxu0
    %1146 = vdwg.mxu0
    %v1148 = vsel %vm918, %v355, 0
    %v1151 = vsel %vm918, %v635, 0
    %1153 = vmatprep.subr.mxu0 0.0
    %1154 = vmatpush1.xpose.msra.mxu0 %v1151
    %1155 = vmatprep.subr.mxu0 0.0
    %1156 = vmatpush1.xpose.msra.mxu0 0.0
    %1157 = vmatprep.subr.mxu0 0.0
    %1158 = vmatpush1.xpose.msra.mxu0 0.0
    %1159 = vmatprep.subr.mxu0 0.0
    %1160 = vmatpush1.xpose.msra.mxu0 0.0
    %1161 = vmatprep.subr.mxu0 0.0
    %1162 = vmatpush1.xpose.msra.mxu0 0.0
    %1163 = vmatprep.subr.mxu0 0.0
    %1164 = vmatpush1.xpose.msra.mxu0 0.0
    %1165 = vmatprep.subr.mxu0 0.0
    %1166 = vmatpush1.xpose.msra.mxu0 0.0
    %1167 = vmatprep.subr.mxu0 0.0
    %1168 = vmatpush1.xpose.msra.mxu0 0.0
    %1169 = vmatprep.subr.mxu0 0.0
    %1170 = vmatpush1.xpose.msra.mxu0 0.0
    %1171 = vmatprep.subr.mxu0 0.0
    %1172 = vmatpush1.xpose.msra.mxu0 0.0
    %1173 = vmatprep.subr.mxu0 0.0
    %1174 = vmatpush1.xpose.msra.mxu0 0.0
    %1175 = vmatprep.subr.mxu0 0.0
    %1176 = vmatpush1.xpose.msra.mxu0 0.0
    %1177 = vmatprep.subr.mxu0 0.0
    %1178 = vmatpush1.xpose.msra.mxu0 0.0
    %1179 = vmatprep.subr.mxu0 0.0
    %1180 = vmatpush1.xpose.msra.mxu0 0.0
    %1181 = vmatprep.subr.mxu0 0.0
    %1182 = vmatpush1.xpose.msra.mxu0 0.0
    %1183 = vmatprep.subr.mxu0 0.0
    %1184 = vmatpush1.xpose.msra.mxu0 0.0
    %1185 = vmatprep.subr.mxu0 0.0
    %1186 = vmatpush1.xpose.msra.mxu0 0.0
    %1187 = vmatprep.subr.mxu0 0.0
    %1188 = vmatpush1.xpose.msra.mxu0 0.0
    %1189 = vmatprep.subr.mxu0 0.0
    %1190 = vmatpush1.xpose.msra.mxu0 0.0
    %1191 = vmatprep.subr.mxu0 0.0
    %1192 = vmatpush1.xpose.msra.mxu0 0.0
    %1193 = vmatprep.subr.mxu0 0.0
    %1194 = vmatpush1.xpose.msra.mxu0 0.0
    %1195 = vmatprep.subr.mxu0 0.0
    %1196 = vmatpush1.xpose.msra.mxu0 0.0
    %1197 = vmatprep.subr.mxu0 0.0
    %1198 = vmatpush1.xpose.msra.mxu0 0.0
    %1199 = vmatprep.subr.mxu0 0.0
    %1200 = vmatpush1.xpose.msra.mxu0 0.0
    %1201 = vmatprep.subr.mxu0 0.0
    %1202 = vmatpush1.xpose.msra.mxu0 0.0
    %1203 = vmatprep.subr.mxu0 0.0
    %1204 = vmatpush1.xpose.msra.mxu0 0.0
    %1205 = vmatprep.subr.mxu0 0.0
    %1206 = vmatpush1.xpose.msra.mxu0 0.0
    %1207 = vmatprep.subr.mxu0 0.0
    %1208 = vmatpush1.xpose.msra.mxu0 0.0
    %1209 = vmatprep.subr.mxu0 0.0
    %1210 = vmatpush1.xpose.msra.mxu0 0.0
    %1211 = vmatprep.subr.mxu0 0.0
    %1212 = vmatpush1.xpose.msra.mxu0 0.0
    %1213 = vmatprep.subr.mxu0 0.0
    %1214 = vmatpush1.xpose.msra.mxu0 0.0
    %1215 = vmatprep.subr.mxu0 0.0
    %1216 = vmatpush1.xpose.msra.mxu0 0.0
    %1217 = vmatprep.mubr.f32.mxu0 0.0
    %1218 = vmatmul.mubr.f32.gmra.mrb[0].mxu0 %v1148
    %v1219 = vpop.f32.mrb[0].mxu0
    %v1220 = vadd.f32 0.0, %v1219
    %v1221 = vpop.f32.mrb[0].mxu0
    %1222 = vdwg.mxu0
    %v1223 = vmul.f32 %v992, 0.35355338
    %v1224 = vmul.f32 %v1068, 0.35355338
    %v1225 = vmul.f32 %v1144, 0.35355338
    %v1226 = vmul.f32 %v1220, 0.35355338
    %v1227 = vsel %vm918, %v1223, -inf
    %1228 = vmax.xlane.f32.xlu0 %v1227
    %v1229 = vpop.xlane.xlu0 %1228
    %v1230 = vsel %vm918, %v1224, -inf
    %1231 = vmax.xlane.f32.xlu0 %v1230
    %v1232 = vpop.xlane.xlu0 %1231
    %v1233 = vsel %vm918, %v1225, -inf
    %1234 = vmax.xlane.f32.xlu0 %v1233
    %v1235 = vpop.xlane.xlu0 %1234
    %v1236 = vsel %vm918, %v1226, -inf
    %1237 = vmax.xlane.f32.xlu0 %v1236
    %v1238 = vpop.xlane.xlu0 %1237
    %v1239 = vsub.f32 %v1223, %v1229
    %v1240 = vsub.f32 %v1224, %v1232
    %v1241 = vsub.f32 %v1225, %v1235
    %v1242 = vsub.f32 %v1226, %v1238
    %v1243 = vmul.f32 %v1239, 12102203.0
    %v1244 = vmul.f32 %v1240, 12102203.0
    %v1245 = vmul.f32 %v1241, 12102203.0
    %v1246 = vmul.f32 %v1242, 12102203.0
    %v1247 = vadd.f32 %v1243, 1.0649868e+09
    %v1248 = vadd.f32 %v1244, 1.0649868e+09
    %v1249 = vadd.f32 %v1245, 1.0649868e+09
    %v1250 = vadd.f32 %v1246, 1.0649868e+09
    %vm1251 = vcmp.lt.f32.partialorder %v1247, 8388608.0
    %vm1252 = vcmp.lt.f32.partialorder %v1248, 8388608.0
    %vm1253 = vcmp.lt.f32.partialorder %v1249, 8388608.0
    %vm1254 = vcmp.lt.f32.partialorder %v1250, 8388608.0
    %v1255 = vsel %vm1251, 0.0, %v1247
    %v1256 = vsel %vm1252, 0.0, %v1248
    %v1257 = vsel %vm1253, 0.0, %v1249
    %v1258 = vsel %vm1254, 0.0, %v1250
    %v1259 = vmin.f32 %v1255, 2.139095e+09
    %v1260 = vmin.f32 %v1256, 2.139095e+09
    %v1261 = vmin.f32 %v1257, 2.139095e+09
    %v1262 = vmin.f32 %v1258, 2.139095e+09
    %v1263 = vcvt.f32.s32.to.zero.pseudo %v1259
    %v1264 = vcvt.f32.s32.to.zero.pseudo %v1260
    %v1265 = vcvt.f32.s32.to.zero.pseudo %v1261
    %v1266 = vcvt.f32.s32.to.zero.pseudo %v1262
    %v1271 = vsel %vm918, %v1263, 0.0
    %1272 = vadd.xlane.f32.xlu0 %v1271
    %v1273 = vpop.xlane.xlu0 %1272
    %v1274 = vsel %vm918, %v1264, 0.0
    %1275 = vadd.xlane.f32.xlu0 %v1274
    %v1276 = vpop.xlane.xlu0 %1275
    %v1277 = vsel %vm918, %v1265, 0.0
    %1278 = vadd.xlane.f32.xlu0 %v1277
    %v1279 = vpop.xlane.xlu0 %1278
    %v1280 = vsel %vm918, %v1266, 0.0
    %1281 = vadd.xlane.f32.xlu0 %v1280
    %v1282 = vpop.xlane.xlu0 %1281
    %v1283 = vrcp.pop %v1273
    %v1284 = vrcp.pop %v1276
    %v1285 = vrcp.pop %v1279
    %v1286 = vrcp.pop %v1282
    %v1287 = vmul.f32 %v1263, %v1283
    %v1288 = vmul.f32 %v1264, %v1284
    %v1289 = vmul.f32 %v1265, %v1285
    %v1290 = vmul.f32 %v1266, %v1286
    %v1292 = vsel %vm918, %v1287, 0
    %1294 = vmatprep.subr.mxu0 0.0
    %1295 = vmatpush1.msra.mxu0 %v705
    %1296 = vmatprep.subr.mxu0 0.0
    %1297 = vmatpush1.msra.mxu0 0.0
    %1298 = vmatprep.subr.mxu0 0.0
    %1299 = vmatpush1.msra.mxu0 0.0
    %1300 = vmatprep.subr.mxu0 0.0
    %1301 = vmatpush1.msra.mxu0 0.0
    %1302 = vmatprep.subr.mxu0 0.0
    %1303 = vmatpush1.msra.mxu0 0.0
    %1304 = vmatprep.subr.mxu0 0.0
    %1305 = vmatpush1.msra.mxu0 0.0
    %1306 = vmatprep.subr.mxu0 0.0
    %1307 = vmatpush1.msra.mxu0 0.0
    %1308 = vmatprep.subr.mxu0 0.0
    %1309 = vmatpush1.msra.mxu0 0.0
    %1310 = vmatprep.subr.mxu0 0.0
    %1311 = vmatpush1.msra.mxu0 0.0
    %1312 = vmatprep.subr.mxu0 0.0
    %1313 = vmatpush1.msra.mxu0 0.0
    %1314 = vmatprep.subr.mxu0 0.0
    %1315 = vmatpush1.msra.mxu0 0.0
    %1316 = vmatprep.subr.mxu0 0.0
    %1317 = vmatpush1.msra.mxu0 0.0
    %1318 = vmatprep.subr.mxu0 0.0
    %1319 = vmatpush1.msra.mxu0 0.0
    %1320 = vmatprep.subr.mxu0 0.0
    %1321 = vmatpush1.msra.mxu0 0.0
    %1322 = vmatprep.subr.mxu0 0.0
    %1323 = vmatpush1.msra.mxu0 0.0
    %1324 = vmatprep.subr.mxu0 0.0
    %1325 = vmatpush1.msra.mxu0 0.0
    %1326 = vmatprep.subr.mxu0 0.0
    %1327 = vmatpush1.msra.mxu0 0.0
    %1328 = vmatprep.subr.mxu0 0.0
    %1329 = vmatpush1.msra.mxu0 0.0
    %1330 = vmatprep.subr.mxu0 0.0
    %1331 = vmatpush1.msra.mxu0 0.0
    %1332 = vmatprep.subr.mxu0 0.0
    %1333 = vmatpush1.msra.mxu0 0.0
    %1334 = vmatprep.subr.mxu0 0.0
    %1335 = vmatpush1.msra.mxu0 0.0
    %1336 = vmatprep.subr.mxu0 0.0
    %1337 = vmatpush1.msra.mxu0 0.0
    %1338 = vmatprep.subr.mxu0 0.0
    %1339 = vmatpush1.msra.mxu0 0.0
    %1340 = vmatprep.subr.mxu0 0.0
    %1341 = vmatpush1.msra.mxu0 0.0
    %1342 = vmatprep.subr.mxu0 0.0
    %1343 = vmatpush1.msra.mxu0 0.0
    %1344 = vmatprep.subr.mxu0 0.0
    %1345 = vmatpush1.msra.mxu0 0.0
    %1346 = vmatprep.subr.mxu0 0.0
    %1347 = vmatpush1.msra.mxu0 0.0
    %1348 = vmatprep.subr.mxu0 0.0
    %1349 = vmatpush1.msra.mxu0 0.0
    %1350 = vmatprep.subr.mxu0 0.0
    %1351 = vmatpush1.msra.mxu0 0.0
    %1352 = vmatprep.subr.mxu0 0.0
    %1353 = vmatpush1.msra.mxu0 0.0
    %1354 = vmatprep.subr.mxu0 0.0
    %1355 = vmatpush1.msra.mxu0 0.0
    %1356 = vmatprep.subr.mxu0 0.0
    %1357 = vmatpush1.msra.mxu0 0.0
    %1358 = vmatprep.mubr.f32.mxu0 0.0
    %1359 = vmatmul.mubr.f32.gmra.mrb[0].mxu0 %v1292
    %v1360 = vpop.f32.mrb[0].mxu0
    %v1361 = vadd.f32 0.0, %v1360
    %v1362 = vpop.f32.mrb[0].mxu0
    %1363 = vdwg.mxu0
    %v1365 = vsel %vm918, %v1288, 0
    %1367 = vmatprep.subr.mxu0 0.0
    %1368 = vmatpush1.msra.mxu0 %v775
    %1369 = vmatprep.subr.mxu0 0.0
    %1370 = vmatpush1.msra.mxu0 0.0
    %1371 = vmatprep.subr.mxu0 0.0
    %1372 = vmatpush1.msra.mxu0 0.0
    %1373 = vmatprep.subr.mxu0 0.0
    %1374 = vmatpush1.msra.mxu0 0.0
    %1375 = vmatprep.subr.mxu0 0.0
    %1376 = vmatpush1.msra.mxu0 0.0
    %1377 = vmatprep.subr.mxu0 0.0
    %1378 = vmatpush1.msra.mxu0 0.0
    %1379 = vmatprep.subr.mxu0 0.0
    %1380 = vmatpush1.msra.mxu0 0.0
    %1381 = vmatprep.subr.mxu0 0.0
    %1382 = vmatpush1.msra.mxu0 0.0
    %1383 = vmatprep.subr.mxu0 0.0
    %1384 = vmatpush1.msra.mxu0 0.0
    %1385 = vmatprep.subr.mxu0 0.0
    %1386 = vmatpush1.msra.mxu0 0.0
    %1387 = vmatprep.subr.mxu0 0.0
    %1388 = vmatpush1.msra.mxu0 0.0
    %1389 = vmatprep.subr.mxu0 0.0
    %1390 = vmatpush1.msra.mxu0 0.0
    %1391 = vmatprep.subr.mxu0 0.0
    %1392 = vmatpush1.msra.mxu0 0.0
    %1393 = vmatprep.subr.mxu0 0.0
    %1394 = vmatpush1.msra.mxu0 0.0
    %1395 = vmatprep.subr.mxu0 0.0
    %1396 = vmatpush1.msra.mxu0 0.0
    %1397 = vmatprep.subr.mxu0 0.0
    %1398 = vmatpush1.msra.mxu0 0.0
    %1399 = vmatprep.subr.mxu0 0.0
    %1400 = vmatpush1.msra.mxu0 0.0
    %1401 = vmatprep.subr.mxu0 0.0
    %1402 = vmatpush1.msra.mxu0 0.0
    %1403 = vmatprep.subr.mxu0 0.0
    %1404 = vmatpush1.msra.mxu0 0.0
    %1405 = vmatprep.subr.mxu0 0.0
    %1406 = vmatpush1.msra.mxu0 0.0
    %1407 = vmatprep.subr.mxu0 0.0
    %1408 = vmatpush1.msra.mxu0 0.0
    %1409 = vmatprep.subr.mxu0 0.0
    %1410 = vmatpush1.msra.mxu0 0.0
    %1411 = vmatprep.subr.mxu0 0.0
    %1412 = vmatpush1.msra.mxu0 0.0
    %1413 = vmatprep.subr.mxu0 0.0
    %1414 = vmatpush1.msra.mxu0 0.0
    %1415 = vmatprep.subr.mxu0 0.0
    %1416 = vmatpush1.msra.mxu0 0.0
    %1417 = vmatprep.subr.mxu0 0.0
    %1418 = vmatpush1.msra.mxu0 0.0
    %1419 = vmatprep.subr.mxu0 0.0
    %1420 = vmatpush1.msra.mxu0 0.0
    %1421 = vmatprep.subr.mxu0 0.0
    %1422 = vmatpush1.msra.mxu0 0.0
    %1423 = vmatprep.subr.mxu0 0.0
    %1424 = vmatpush1.msra.mxu0 0.0
    %1425 = vmatprep.subr.mxu0 0.0
    %1426 = vmatpush1.msra.mxu0 0.0
    %1427 = vmatprep.subr.mxu0 0.0
    %1428 = vmatpush1.msra.mxu0 0.0
    %1429 = vmatprep.subr.mxu0 0.0
    %1430 = vmatpush1.msra.mxu0 0.0
    %1431 = vmatprep.mubr.f32.mxu0 0.0
    %1432 = vmatmul.mubr.f32.gmra.mrb[0].mxu0 %v1365
    %v1433 = vpop.f32.mrb[0].mxu0
    %v1434 = vadd.f32 0.0, %v1433
    %v1435 = vpop.f32.mrb[0].mxu0
    %1436 = vdwg.mxu0
    %v1438 = vsel %vm918, %v1289, 0
    %1440 = vmatprep.subr.mxu0 0.0
    %1441 = vmatpush1.msra.mxu0 %v845
    %1442 = vmatprep.subr.mxu0 0.0
    %1443 = vmatpush1.msra.mxu0 0.0
    %1444 = vmatprep.subr.mxu0 0.0
    %1445 = vmatpush1.msra.mxu0 0.0
    %1446 = vmatprep.subr.mxu0 0.0
    %1447 = vmatpush1.msra.mxu0 0.0
    %1448 = vmatprep.subr.mxu0 0.0
    %1449 = vmatpush1.msra.mxu0 0.0
    %1450 = vmatprep.subr.mxu0 0.0
    %1451 = vmatpush1.msra.mxu0 0.0
    %1452 = vmatprep.subr.mxu0 0.0
    %1453 = vmatpush1.msra.mxu0 0.0
    %1454 = vmatprep.subr.mxu0 0.0
    %1455 = vmatpush1.msra.mxu0 0.0
    %1456 = vmatprep.subr.mxu0 0.0
    %1457 = vmatpush1.msra.mxu0 0.0
    %1458 = vmatprep.subr.mxu0 0.0
    %1459 = vmatpush1.msra.mxu0 0.0
    %1460 = vmatprep.subr.mxu0 0.0
    %1461 = vmatpush1.msra.mxu0 0.0
    %1462 = vmatprep.subr.mxu0 0.0
    %1463 = vmatpush1.msra.mxu0 0.0
    %1464 = vmatprep.subr.mxu0 0.0
    %1465 = vmatpush1.msra.mxu0 0.0
    %1466 = vmatprep.subr.mxu0 0.0
    %1467 = vmatpush1.msra.mxu0 0.0
    %1468 = vmatprep.subr.mxu0 0.0
    %1469 = vmatpush1.msra.mxu0 0.0
    %1470 = vmatprep.subr.mxu0 0.0
    %1471 = vmatpush1.msra.mxu0 0.0
    %1472 = vmatprep.subr.mxu0 0.0
    %1473 = vmatpush1.msra.mxu0 0.0
    %1474 = vmatprep.subr.mxu0 0.0
    %1475 = vmatpush1.msra.mxu0 0.0
    %1476 = vmatprep.subr.mxu0 0.0
    %1477 = vmatpush1.msra.mxu0 0.0
    %1478 = vmatprep.subr.mxu0 0.0
    %1479 = vmatpush1.msra.mxu0 0.0
    %1480 = vmatprep.subr.mxu0 0.0
    %1481 = vmatpush1.msra.mxu0 0.0
    %1482 = vmatprep.subr.mxu0 0.0
    %1483 = vmatpush1.msra.mxu0 0.0
    %1484 = vmatprep.subr.mxu0 0.0
    %1485 = vmatpush1.msra.mxu0 0.0
    %1486 = vmatprep.subr.mxu0 0.0
    %1487 = vmatpush1.msra.mxu0 0.0
    %1488 = vmatprep.subr.mxu0 0.0
    %1489 = vmatpush1.msra.mxu0 0.0
    %1490 = vmatprep.subr.mxu0 0.0
    %1491 = vmatpush1.msra.mxu0 0.0
    %1492 = vmatprep.subr.mxu0 0.0
    %1493 = vmatpush1.msra.mxu0 0.0
    %1494 = vmatprep.subr.mxu0 0.0
    %1495 = vmatpush1.msra.mxu0 0.0
    %1496 = vmatprep.subr.mxu0 0.0
    %1497 = vmatpush1.msra.mxu0 0.0
    %1498 = vmatprep.subr.mxu0 0.0
    %1499 = vmatpush1.msra.mxu0 0.0
    %1500 = vmatprep.subr.mxu0 0.0
    %1501 = vmatpush1.msra.mxu0 0.0
    %1502 = vmatprep.subr.mxu0 0.0
    %1503 = vmatpush1.msra.mxu0 0.0
    %1504 = vmatprep.mubr.f32.mxu0 0.0
    %1505 = vmatmul.mubr.f32.gmra.mrb[0].mxu0 %v1438
    %v1506 = vpop.f32.mrb[0].mxu0
    %v1507 = vadd.f32 0.0, %v1506
    %v1508 = vpop.f32.mrb[0].mxu0
    %1509 = vdwg.mxu0
    %v1511 = vsel %vm918, %v1290, 0
    %1513 = vmatprep.subr.mxu0 0.0
    %1514 = vmatpush1.msra.mxu0 %v915
    %1515 = vmatprep.subr.mxu0 0.0
    %1516 = vmatpush1.msra.mxu0 0.0
    %1517 = vmatprep.subr.mxu0 0.0
    %1518 = vmatpush1.msra.mxu0 0.0
    %1519 = vmatprep.subr.mxu0 0.0
    %1520 = vmatpush1.msra.mxu0 0.0
    %1521 = vmatprep.subr.mxu0 0.0
    %1522 = vmatpush1.msra.mxu0 0.0
    %1523 = vmatprep.subr.mxu0 0.0
    %1524 = vmatpush1.msra.mxu0 0.0
    %1525 = vmatprep.subr.mxu0 0.0
    %1526 = vmatpush1.msra.mxu0 0.0
    %1527 = vmatprep.subr.mxu0 0.0
    %1528 = vmatpush1.msra.mxu0 0.0
    %1529 = vmatprep.subr.mxu0 0.0
    %1530 = vmatpush1.msra.mxu0 0.0
    %1531 = vmatprep.subr.mxu0 0.0
    %1532 = vmatpush1.msra.mxu0 0.0
    %1533 = vmatprep.subr.mxu0 0.0
    %1534 = vmatpush1.msra.mxu0 0.0
    %1535 = vmatprep.subr.mxu0 0.0
    %1536 = vmatpush1.msra.mxu0 0.0
    %1537 = vmatprep.subr.mxu0 0.0
    %1538 = vmatpush1.msra.mxu0 0.0
    %1539 = vmatprep.subr.mxu0 0.0
    %1540 = vmatpush1.msra.mxu0 0.0
    %1541 = vmatprep.subr.mxu0 0.0
    %1542 = vmatpush1.msra.mxu0 0.0
    %1543 = vmatprep.subr.mxu0 0.0
    %1544 = vmatpush1.msra.mxu0 0.0
    %1545 = vmatprep.subr.mxu0 0.0
    %1546 = vmatpush1.msra.mxu0 0.0
    %1547 = vmatprep.subr.mxu0 0.0
    %1548 = vmatpush1.msra.mxu0 0.0
    %1549 = vmatprep.subr.mxu0 0.0
    %1550 = vmatpush1.msra.mxu0 0.0
    %1551 = vmatprep.subr.mxu0 0.0
    %1552 = vmatpush1.msra.mxu0 0.0
    %1553 = vmatprep.subr.mxu0 0.0
    %1554 = vmatpush1.msra.mxu0 0.0
    %1555 = vmatprep.subr.mxu0 0.0
    %1556 = vmatpush1.msra.mxu0 0.0
    %1557 = vmatprep.subr.mxu0 0.0
    %1558 = vmatpush1.msra.mxu0 0.0
    %1559 = vmatprep.subr.mxu0 0.0
    %1560 = vmatpush1.msra.mxu0 0.0
    %1561 = vmatprep.subr.mxu0 0.0
    %1562 = vmatpush1.msra.mxu0 0.0
    %1563 = vmatprep.subr.mxu0 0.0
    %1564 = vmatpush1.msra.mxu0 0.0
    %1565 = vmatprep.subr.mxu0 0.0
    %1566 = vmatpush1.msra.mxu0 0.0
    %1567 = vmatprep.subr.mxu0 0.0
    %1568 = vmatpush1.msra.mxu0 0.0
    %1569 = vmatprep.subr.mxu0 0.0
    %1570 = vmatpush1.msra.mxu0 0.0
    %1571 = vmatprep.subr.mxu0 0.0
    %1572 = vmatpush1.msra.mxu0 0.0
    %1573 = vmatprep.subr.mxu0 0.0
    %1574 = vmatpush1.msra.mxu0 0.0
    %1575 = vmatprep.subr.mxu0 0.0
    %1576 = vmatpush1.msra.mxu0 0.0
    %1577 = vmatprep.mubr.f32.mxu0 0.0
    %1578 = vmatmul.mubr.f32.gmra.mrb[0].mxu0 %v1511
    %v1579 = vpop.f32.mrb[0].mxu0
    %v1580 = vadd.f32 0.0, %v1579
    %v1581 = vpop.f32.mrb[0].mxu0
    %1582 = vdwg.mxu0
    %v1584 = vsel %vm918, %v1361, 0
    %1586 = vmatprep.subr.mxu0 0.0
    %1587 = vmatpush1.msra.mxu0 %v70
    %1588 = vmatprep.subr.mxu0 0.0
    %1589 = vmatpush1.msra.mxu0 0.0
    %1590 = vmatprep.subr.mxu0 0.0
    %1591 = vmatpush1.msra.mxu0 0.0
    %1592 = vmatprep.subr.mxu0 0.0
    %1593 = vmatpush1.msra.mxu0 0.0
    %1594 = vmatprep.subr.mxu0 0.0
    %1595 = vmatpush1.msra.mxu0 0.0
    %1596 = vmatprep.subr.mxu0 0.0
    %1597 = vmatpush1.msra.mxu0 0.0
    %1598 = vmatprep.subr.mxu0 0.0
    %1599 = vmatpush1.msra.mxu0 0.0
    %1600 = vmatprep.subr.mxu0 0.0
    %1601 = vmatpush1.msra.mxu0 0.0
    %1602 = vmatprep.subr.mxu0 0.0
    %1603 = vmatpush1.msra.mxu0 0.0
    %1604 = vmatprep.subr.mxu0 0.0
    %1605 = vmatpush1.msra.mxu0 0.0
    %1606 = vmatprep.subr.mxu0 0.0
    %1607 = vmatpush1.msra.mxu0 0.0
    %1608 = vmatprep.subr.mxu0 0.0
    %1609 = vmatpush1.msra.mxu0 0.0
    %1610 = vmatprep.subr.mxu0 0.0
    %1611 = vmatpush1.msra.mxu0 0.0
    %1612 = vmatprep.subr.mxu0 0.0
    %1613 = vmatpush1.msra.mxu0 0.0
    %1614 = vmatprep.subr.mxu0 0.0
    %1615 = vmatpush1.msra.mxu0 0.0
    %1616 = vmatprep.subr.mxu0 0.0
    %1617 = vmatpush1.msra.mxu0 0.0
    %1618 = vmatprep.subr.mxu0 0.0
    %1619 = vmatpush1.msra.mxu0 0.0
    %1620 = vmatprep.subr.mxu0 0.0
    %1621 = vmatpush1.msra.mxu0 0.0
    %1622 = vmatprep.subr.mxu0 0.0
    %1623 = vmatpush1.msra.mxu0 0.0
    %1624 = vmatprep.subr.mxu0 0.0
    %1625 = vmatpush1.msra.mxu0 0.0
    %1626 = vmatprep.subr.mxu0 0.0
    %1627 = vmatpush1.msra.mxu0 0.0
    %1628 = vmatprep.subr.mxu0 0.0
    %1629 = vmatpush1.msra.mxu0 0.0
    %1630 = vmatprep.subr.mxu0 0.0
    %1631 = vmatpush1.msra.mxu0 0.0
    %1632 = vmatprep.subr.mxu0 0.0
    %1633 = vmatpush1.msra.mxu0 0.0
    %1634 = vmatprep.subr.mxu0 0.0
    %1635 = vmatpush1.msra.mxu0 0.0
    %1636 = vmatprep.subr.mxu0 0.0
    %1637 = vmatpush1.msra.mxu0 0.0
    %1638 = vmatprep.subr.mxu0 0.0
    %1639 = vmatpush1.msra.mxu0 0.0
    %1640 = vmatprep.subr.mxu0 0.0
    %1641 = vmatpush1.msra.mxu0 0.0
    %1642 = vmatprep.subr.mxu0 0.0
    %1643 = vmatpush1.msra.mxu0 0.0
    %1644 = vmatprep.subr.mxu0 0.0
    %1645 = vmatpush1.msra.mxu0 0.0
    %1646 = vmatprep.subr.mxu0 0.0
    %1647 = vmatpush1.msra.mxu0 0.0
    %1648 = vmatprep.subr.mxu0 0.0
    %1649 = vmatpush1.msra.mxu0 0.0
    %1650 = vmatprep.mubr.f32.mxu0 0.0
    %1651 = vmatmul.mubr.f32.gmra.mrb[0].mxu0 %v1584
    %v1652 = vpop.f32.mrb[0].mxu0
    %v1653 = vadd.f32 0.0, %v1652
    %v1654 = vpop.f32.mrb[0].mxu0
    %1655 = vdwg.mxu0
    %v1657 = vsel %vm918, %v1434, 0
    %1659 = vmatprep.subr.mxu0 0.0
    %1660 = vmatpush1.msra.mxu0 %v71
    %1661 = vmatprep.subr.mxu0 0.0
    %1662 = vmatpush1.msra.mxu0 0.0
    %1663 = vmatprep.subr.mxu0 0.0
    %1664 = vmatpush1.msra.mxu0 0.0
    %1665 = vmatprep.subr.mxu0 0.0
    %1666 = vmatpush1.msra.mxu0 0.0
    %1667 = vmatprep.subr.mxu0 0.0
    %1668 = vmatpush1.msra.mxu0 0.0
    %1669 = vmatprep.subr.mxu0 0.0
    %1670 = vmatpush1.msra.mxu0 0.0
    %1671 = vmatprep.subr.mxu0 0.0
    %1672 = vmatpush1.msra.mxu0 0.0
    %1673 = vmatprep.subr.mxu0 0.0
    %1674 = vmatpush1.msra.mxu0 0.0
    %1675 = vmatprep.subr.mxu0 0.0
    %1676 = vmatpush1.msra.mxu0 0.0
    %1677 = vmatprep.subr.mxu0 0.0
    %1678 = vmatpush1.msra.mxu0 0.0
    %1679 = vmatprep.subr.mxu0 0.0
    %1680 = vmatpush1.msra.mxu0 0.0
    %1681 = vmatprep.subr.mxu0 0.0
    %1682 = vmatpush1.msra.mxu0 0.0
    %1683 = vmatprep.subr.mxu0 0.0
    %1684 = vmatpush1.msra.mxu0 0.0
    %1685 = vmatprep.subr.mxu0 0.0
    %1686 = vmatpush1.msra.mxu0 0.0
    %1687 = vmatprep.subr.mxu0 0.0
    %1688 = vmatpush1.msra.mxu0 0.0
    %1689 = vmatprep.subr.mxu0 0.0
    %1690 = vmatpush1.msra.mxu0 0.0
    %1691 = vmatprep.subr.mxu0 0.0
    %1692 = vmatpush1.msra.mxu0 0.0
    %1693 = vmatprep.subr.mxu0 0.0
    %1694 = vmatpush1.msra.mxu0 0.0
    %1695 = vmatprep.subr.mxu0 0.0
    %1696 = vmatpush1.msra.mxu0 0.0
    %1697 = vmatprep.subr.mxu0 0.0
    %1698 = vmatpush1.msra.mxu0 0.0
    %1699 = vmatprep.subr.mxu0 0.0
    %1700 = vmatpush1.msra.mxu0 0.0
    %1701 = vmatprep.subr.mxu0 0.0
    %1702 = vmatpush1.msra.mxu0 0.0
    %1703 = vmatprep.subr.mxu0 0.0
    %1704 = vmatpush1.msra.mxu0 0.0
    %1705 = vmatprep.subr.mxu0 0.0
    %1706 = vmatpush1.msra.mxu0 0.0
    %1707 = vmatprep.subr.mxu0 0.0
    %1708 = vmatpush1.msra.mxu0 0.0
    %1709 = vmatprep.subr.mxu0 0.0
    %1710 = vmatpush1.msra.mxu0 0.0
    %1711 = vmatprep.subr.mxu0 0.0
    %1712 = vmatpush1.msra.mxu0 0.0
    %1713 = vmatprep.subr.mxu0 0.0
    %1714 = vmatpush1.msra.mxu0 0.0
    %1715 = vmatprep.subr.mxu0 0.0
    %1716 = vmatpush1.msra.mxu0 0.0
    %1717 = vmatprep.subr.mxu0 0.0
    %1718 = vmatpush1.msra.mxu0 0.0
    %1719 = vmatprep.subr.mxu0 0.0
    %1720 = vmatpush1.msra.mxu0 0.0
    %1721 = vmatprep.subr.mxu0 0.0
    %1722 = vmatpush1.msra.mxu0 0.0
    %1723 = vmatprep.mubr.f32.mxu0 0.0
    %1724 = vmatmul.mubr.f32.gmra.mrb[0].mxu0 %v1657
    %v1725 = vpop.f32.mrb[0].mxu0
    %v1726 = vadd.f32 0.0, %v1725
    %v1727 = vpop.f32.mrb[0].mxu0
    %1728 = vdwg.mxu0
    %v1730 = vsel %vm918, %v1507, 0
    %1732 = vmatprep.subr.mxu0 0.0
    %1733 = vmatpush1.msra.mxu0 %v72
    %1734 = vmatprep.subr.mxu0 0.0
    %1735 = vmatpush1.msra.mxu0 0.0
    %1736 = vmatprep.subr.mxu0 0.0
    %1737 = vmatpush1.msra.mxu0 0.0
    %1738 = vmatprep.subr.mxu0 0.0
    %1739 = vmatpush1.msra.mxu0 0.0
    %1740 = vmatprep.subr.mxu0 0.0
    %1741 = vmatpush1.msra.mxu0 0.0
    %1742 = vmatprep.subr.mxu0 0.0
    %1743 = vmatpush1.msra.mxu0 0.0
    %1744 = vmatprep.subr.mxu0 0.0
    %1745 = vmatpush1.msra.mxu0 0.0
    %1746 = vmatprep.subr.mxu0 0.0
    %1747 = vmatpush1.msra.mxu0 0.0
    %1748 = vmatprep.subr.mxu0 0.0
    %1749 = vmatpush1.msra.mxu0 0.0
    %1750 = vmatprep.subr.mxu0 0.0
    %1751 = vmatpush1.msra.mxu0 0.0
    %1752 = vmatprep.subr.mxu0 0.0
    %1753 = vmatpush1.msra.mxu0 0.0
    %1754 = vmatprep.subr.mxu0 0.0
    %1755 = vmatpush1.msra.mxu0 0.0
    %1756 = vmatprep.subr.mxu0 0.0
    %1757 = vmatpush1.msra.mxu0 0.0
    %1758 = vmatprep.subr.mxu0 0.0
    %1759 = vmatpush1.msra.mxu0 0.0
    %1760 = vmatprep.subr.mxu0 0.0
    %1761 = vmatpush1.msra.mxu0 0.0
    %1762 = vmatprep.subr.mxu0 0.0
    %1763 = vmatpush1.msra.mxu0 0.0
    %1764 = vmatprep.subr.mxu0 0.0
    %1765 = vmatpush1.msra.mxu0 0.0
    %1766 = vmatprep.subr.mxu0 0.0
    %1767 = vmatpush1.msra.mxu0 0.0
    %1768 = vmatprep.subr.mxu0 0.0
    %1769 = vmatpush1.msra.mxu0 0.0
    %1770 = vmatprep.subr.mxu0 0.0
    %1771 = vmatpush1.msra.mxu0 0.0
    %1772 = vmatprep.subr.mxu0 0.0
    %1773 = vmatpush1.msra.mxu0 0.0
    %1774 = vmatprep.subr.mxu0 0.0
    %1775 = vmatpush1.msra.mxu0 0.0
    %1776 = vmatprep.subr.mxu0 0.0
    %1777 = vmatpush1.msra.mxu0 0.0
    %1778 = vmatprep.subr.mxu0 0.0
    %1779 = vmatpush1.msra.mxu0 0.0
    %1780 = vmatprep.subr.mxu0 0.0
    %1781 = vmatpush1.msra.mxu0 0.0
    %1782 = vmatprep.subr.mxu0 0.0
    %1783 = vmatpush1.msra.mxu0 0.0
    %1784 = vmatprep.subr.mxu0 0.0
    %1785 = vmatpush1.msra.mxu0 0.0
    %1786 = vmatprep.subr.mxu0 0.0
    %1787 = vmatpush1.msra.mxu0 0.0
    %1788 = vmatprep.subr.mxu0 0.0
    %1789 = vmatpush1.msra.mxu0 0.0
    %1790 = vmatprep.subr.mxu0 0.0
    %1791 = vmatpush1.msra.mxu0 0.0
    %1792 = vmatprep.subr.mxu0 0.0
    %1793 = vmatpush1.msra.mxu0 0.0
    %1794 = vmatprep.subr.mxu0 0.0
    %1795 = vmatpush1.msra.mxu0 0.0
    %1796 = vmatprep.mubr.f32.mxu0 0.0
    %1797 = vmatmul.mubr.f32.gmra.mrb[0].mxu0 %v1730
    %v1798 = vpop.f32.mrb[0].mxu0
    %v1799 = vadd.f32 0.0, %v1798
    %v1800 = vpop.f32.mrb[0].mxu0
    %1801 = vdwg.mxu0
    %v1803 = vsel %vm918, %v1580, 0
    %1805 = vmatprep.subr.mxu0 0.0
    %1806 = vmatpush1.msra.mxu0 %v73
    %1807 = vmatprep.subr.mxu0 0.0
    %1808 = vmatpush1.msra.mxu0 0.0
    %1809 = vmatprep.subr.mxu0 0.0
    %1810 = vmatpush1.msra.mxu0 0.0
    %1811 = vmatprep.subr.mxu0 0.0
    %1812 = vmatpush1.msra.mxu0 0.0
    %1813 = vmatprep.subr.mxu0 0.0
    %1814 = vmatpush1.msra.mxu0 0.0
    %1815 = vmatprep.subr.mxu0 0.0
    %1816 = vmatpush1.msra.mxu0 0.0
    %1817 = vmatprep.subr.mxu0 0.0
    %1818 = vmatpush1.msra.mxu0 0.0
    %1819 = vmatprep.subr.mxu0 0.0
    %1820 = vmatpush1.msra.mxu0 0.0
    %1821 = vmatprep.subr.mxu0 0.0
    %1822 = vmatpush1.msra.mxu0 0.0
    %1823 = vmatprep.subr.mxu0 0.0
    %1824 = vmatpush1.msra.mxu0 0.0
    %1825 = vmatprep.subr.mxu0 0.0
    %1826 = vmatpush1.msra.mxu0 0.0
    %1827 = vmatprep.subr.mxu0 0.0
    %1828 = vmatpush1.msra.mxu0 0.0
    %1829 = vmatprep.subr.mxu0 0.0
    %1830 = vmatpush1.msra.mxu0 0.0
    %1831 = vmatprep.subr.mxu0 0.0
    %1832 = vmatpush1.msra.mxu0 0.0
    %1833 = vmatprep.subr.mxu0 0.0
    %1834 = vmatpush1.msra.mxu0 0.0
    %1835 = vmatprep.subr.mxu0 0.0
    %1836 = vmatpush1.msra.mxu0 0.0
    %1837 = vmatprep.subr.mxu0 0.0
    %1838 = vmatpush1.msra.mxu0 0.0
    %1839 = vmatprep.subr.mxu0 0.0
    %1840 = vmatpush1.msra.mxu0 0.0
    %1841 = vmatprep.subr.mxu0 0.0
    %1842 = vmatpush1.msra.mxu0 0.0
    %1843 = vmatprep.subr.mxu0 0.0
    %1844 = vmatpush1.msra.mxu0 0.0
    %1845 = vmatprep.subr.mxu0 0.0
    %1846 = vmatpush1.msra.mxu0 0.0
    %1847 = vmatprep.subr.mxu0 0.0
    %1848 = vmatpush1.msra.mxu0 0.0
    %1849 = vmatprep.subr.mxu0 0.0
    %1850 = vmatpush1.msra.mxu0 0.0
    %1851 = vmatprep.subr.mxu0 0.0
    %1852 = vmatpush1.msra.mxu0 0.0
    %1853 = vmatprep.subr.mxu0 0.0
    %1854 = vmatpush1.msra.mxu0 0.0
    %1855 = vmatprep.subr.mxu0 0.0
    %1856 = vmatpush1.msra.mxu0 0.0
    %1857 = vmatprep.subr.mxu0 0.0
    %1858 = vmatpush1.msra.mxu0 0.0
    %1859 = vmatprep.subr.mxu0 0.0
    %1860 = vmatpush1.msra.mxu0 0.0
    %1861 = vmatprep.subr.mxu0 0.0
    %1862 = vmatpush1.msra.mxu0 0.0
    %1863 = vmatprep.subr.mxu0 0.0
    %1864 = vmatpush1.msra.mxu0 0.0
    %1865 = vmatprep.subr.mxu0 0.0
    %1866 = vmatpush1.msra.mxu0 0.0
    %1867 = vmatprep.subr.mxu0 0.0
    %1868 = vmatpush1.msra.mxu0 0.0
    %1869 = vmatprep.mubr.f32.mxu0 0.0
    %1870 = vmatmul.mubr.f32.gmra.mrb[0].mxu0 %v1803
    %v1871 = vpop.f32.mrb[0].mxu0
    %v1872 = vadd.f32 0.0, %v1871
    %v1873 = vpop.f32.mrb[0].mxu0
    %1874 = vdwg.mxu0
    %v1875 = vsel %vm74, %v1653, 0.0
    %v1876 = vsel %vm74, %v1726, 0.0
    %v1877 = vadd.f32 %v1875, %v1876
    %v1878 = vsel %vm74, %v1799, 0.0
    %v1879 = vadd.f32 %v1877, %v1878
    %v1880 = vsel %vm74, %v1872, 0.0
    %v1881 = vadd.f32 %v1879, %v1880
    %1882 = vst.msk [vmem:[#allocation2] sm:$0xff] %vm74, %v1881
    // Predicated region
    $region22: #{tpu_custom_call.1} parent=1 // pred_check
      _
    $region23: #{tpu_custom_call.1} parent=1 // pred_check_branch
      %1884 = sbr.rel (0) target = $region25
    $region24: #{tpu_custom_call.1} parent=1 // pred_region
      %s1886 = ssub.s32 128, 128
      %1887 = vsyncadd [#allocation3], %s1886
      %s1889 = sshll.u32 [#allocation2], 4
      %s1890 = int_to_ptr.vmem [resolvable:$true] %s1889
      %1892 = dma.vmem_to_hbm [thread:$0]  %s1890, 128, %s5, [#allocation3]
    $region25: #{tpu_custom_call.1} parent=1 // pred_fallthru
      _
    // Predicated region
    $region26: #{tpu_custom_call.1} parent=1 // pred_check
      _
    $region27: #{tpu_custom_call.1} parent=1 // pred_check_branch
      %1894 = sbr.rel (0) target = $region29
    $region28: #{tpu_custom_call.1} parent=1 // pred_region
      %1895 = dma.done [#allocation3], 128
    $region29: #{tpu_custom_call.1} parent=1 // pred_fallthru
      _
    %1896 = vsyncpa [#allocation3], 1

</llo_original>
